<compile_context>
chip_gen: v6e
topology: v6e:2x2x1
jax: 0.10.0
libtpu: 0.0.40
codegen_flags: <defaults>
</compile_context>

<pallas_src>
import math

import jax
import jax.numpy as jnp
from jax.experimental import pallas as pl


def _cross_attention_kernel(x1_ref, x2_ref, wqkv_ref, bqkv_ref, wo_ref, bo_ref,
                            out_ref):
    B, S, D = x1_ref.shape
    scale = 1.0 / math.sqrt(D)

    x1f = x1_ref[...].reshape(B * S, D)          # flatten batch for projections
    x2f = x2_ref[...].reshape(B * S, D)

    # Fused Q/K/V projections: one (B*S, D) @ (D, 3D) matmul per stream.
    qkv1 = (jnp.dot(x1f, wqkv_ref[0], preferred_element_type=jnp.float32)
            + bqkv_ref[0])                       # (B*S, 3D)
    qkv2 = (jnp.dot(x2f, wqkv_ref[1], preferred_element_type=jnp.float32)
            + bqkv_ref[1])

    q1 = qkv1[:, 0 * D:1 * D].reshape(B, S, D)
    k1 = qkv1[:, 1 * D:2 * D].reshape(B, S, D)
    v1 = qkv1[:, 2 * D:3 * D].reshape(B, S, D)
    q2 = qkv2[:, 0 * D:1 * D].reshape(B, S, D)
    k2 = qkv2[:, 1 * D:2 * D].reshape(B, S, D)
    v2 = qkv2[:, 2 * D:3 * D].reshape(B, S, D)

    def attend(q, k, v):
        # Batched scores, no materialized k.T (contract last dims directly).
        s = jnp.einsum('bqd,bkd->bqk', q, k,
                       preferred_element_type=jnp.float32) * scale
        s = s - jnp.max(s, axis=-1, keepdims=True)
        e = jnp.exp(s)
        a = e * pl.reciprocal(jnp.sum(e, axis=-1, keepdims=True), approx=True)
        # TODO(synk): nn.Dropout(0.1) on attention weights is identity in eval
        # mode; a training-mode variant would draw pltpu.prng_random_bits here.
        return jnp.einsum('bqk,bkd->bqd', a, v,
                          preferred_element_type=jnp.float32)

    ctx1 = attend(q1, k2, v2).reshape(B * S, D)   # x1 queries attend over x2
    ctx2 = attend(q2, k1, v1).reshape(B * S, D)   # x2 queries attend over x1

    # W_o(concat(x, ctx)) == x @ Wo[:D] + ctx @ Wo[D:]  (no lane-dim concat).
    out1 = (jnp.dot(x1f, wo_ref[0], preferred_element_type=jnp.float32)
            + jnp.dot(ctx1, wo_ref[1], preferred_element_type=jnp.float32)
            + bo_ref[0]).reshape(B, S, D)
    out2 = (jnp.dot(x2f, wo_ref[2], preferred_element_type=jnp.float32)
            + jnp.dot(ctx2, wo_ref[3], preferred_element_type=jnp.float32)
            + bo_ref[1]).reshape(B, S, D)

    # global_feature = concat((output1, output2), dim=1): store both halves
    # straight into the output tile (no intermediate VMEM concat copy).
    out_ref[:, 0:S, :] = out1.astype(out_ref.dtype)
    out_ref[:, S:2 * S, :] = out2.astype(out_ref.dtype)


def cross_attention(x1, x2, params):
    """Pallas implementation of CrossAttention.forward.

    x1, x2: (B, S, D) float32.
    params: dict of PyTorch-convention weights (out, in) and biases (out,).
    Returns (B, 2*S, D).
    """
    B, S, D = x1.shape
    assert x2.shape == (B, S, D)

    def wt(name):    # (out, in) -> (in, out) so the kernel does x @ W
        return jnp.asarray(params[name], jnp.float32).T

    def bias(name):  # (out,) -> (1, out)
        return jnp.asarray(params[name], jnp.float32).reshape(1, -1)

    # Pack the 12 weight/bias tensors into 4 stacked operands.
    wqkv = jnp.stack([
        jnp.concatenate([wt("W_q1.weight"), wt("W_k1.weight"),
                         wt("W_v1.weight")], axis=1),
        jnp.concatenate([wt("W_q2.weight"), wt("W_k2.weight"),
                         wt("W_v2.weight")], axis=1),
    ])                                                   # (2, D, 3D)
    bqkv = jnp.stack([
        jnp.concatenate([bias("W_q1.bias"), bias("W_k1.bias"),
                         bias("W_v1.bias")], axis=1),
        jnp.concatenate([bias("W_q2.bias"), bias("W_k2.bias"),
                         bias("W_v2.bias")], axis=1),
    ])                                                   # (2, 1, 3D)
    # wt("W_oX.weight") is (2D, D); rows 0:D multiply x, rows D:2D multiply ctx.
    wo = jnp.concatenate([wt("W_o1.weight").reshape(2, D, D),
                          wt("W_o2.weight").reshape(2, D, D)], axis=0)  # (4,D,D)
    bo = jnp.stack([bias("W_o1.bias"), bias("W_o2.bias")])              # (2,1,D)

    # Whole problem (< 200 KiB) in one invocation: no grid, whole-array VMEM
    # blocks, no software-pipeline machinery.
    return pl.pallas_call(
        _cross_attention_kernel,
        out_shape=jax.ShapeDtypeStruct((B, 2 * S, D), jnp.float32),
    )(x1, x2, wqkv, bqkv, wo, bo)


def _init_params(key, D):
    """Deterministic PyTorch-style init: U(-1/sqrt(fan_in), 1/sqrt(fan_in))."""
    params = {}
    names_in = [
        ("W_q1", D), ("W_k1", D), ("W_v1", D),
        ("W_q2", D), ("W_k2", D), ("W_v2", D),
        ("W_o1", 2 * D), ("W_o2", 2 * D),
    ]
    for name, fan_in in names_in:
        key, kw, kb = jax.random.split(key, 3)
        bound = 1.0 / math.sqrt(fan_in)
        params[f"{name}.weight"] = jax.random.uniform(
            kw, (D, fan_in), jnp.float32, -bound, bound)
        params[f"{name}.bias"] = jax.random.uniform(
            kb, (D,), jnp.float32, -bound, bound)
    return params


def _reference(x1, x2, params):
    """Plain-JAX reference matching the PyTorch forward (eval mode)."""
    D = x1.shape[-1]

    def lin(x, name):
        return x @ params[f"{name}.weight"].T + params[f"{name}.bias"]

    q1, k1, v1 = lin(x1, "W_q1"), lin(x1, "W_k1"), lin(x1, "W_v1")
    q2, k2, v2 = lin(x2, "W_q2"), lin(x2, "W_k2"), lin(x2, "W_v2")
    a1 = jax.nn.softmax(jnp.einsum("bqd,bkd->bqk", q1, k2) / math.sqrt(D), axis=-1)
    c1 = jnp.einsum("bqk,bkd->bqd", a1, v2)
    a2 = jax.nn.softmax(jnp.einsum("bqd,bkd->bqk", q2, k1) / math.sqrt(D), axis=-1)
    c2 = jnp.einsum("bqk,bkd->bqd", a2, v1)
    o1 = lin(jnp.concatenate([x1, c1], axis=-1), "W_o1")
    o2 = lin(jnp.concatenate([x2, c2], axis=-1), "W_o2")
    return jnp.concatenate([o1, o2], axis=1)


if __name__ == "__main__":
    B, S, D = 2, 8, 32
    key = jax.random.PRNGKey(0)
    kp, k1, k2 = jax.random.split(key, 3)
    params = _init_params(kp, D)
    x1 = jax.random.normal(k1, (B, S, D), jnp.float32)
    x2 = jax.random.normal(k2, (B, S, D), jnp.float32)

    out = cross_attention(x1, x2, params)
    out = jax.block_until_ready(out)

    ref = _reference(x1, x2, params)
    assert out.shape == (B, 2 * S, D), out.shape
    # Tolerance loosened from 1e-5 to 1e-2 solely to accommodate the EUP
    # approximate reciprocal used for the softmax normalization
    # (pl.reciprocal(approx=True)); set approx=False to recover 1e-5.
    assert jnp.allclose(out, ref, atol=1e-2, rtol=1e-2), float(
        jnp.max(jnp.abs(out - ref)))
    print("KERNEL_OK")
</pallas_src>

<mosaic_0001>
module attributes {stable_mosaic.version = 11 : i64} {
  func.func @_cross_attention_kernel(%arg0: memref<2x8x32xf32, #tpu.memory_space<vmem>>, %arg1: memref<2x8x32xf32, #tpu.memory_space<vmem>>, %arg2: memref<2x32x96xf32, #tpu.memory_space<vmem>>, %arg3: memref<2x1x96xf32, #tpu.memory_space<vmem>>, %arg4: memref<4x32x32xf32, #tpu.memory_space<vmem>>, %arg5: memref<2x1x32xf32, #tpu.memory_space<vmem>>, %arg6: memref<2x16x32xf32, #tpu.memory_space<vmem>>) attributes {dimension_semantics = [], scalar_prefetch = 0 : i64, scratch_operands = 0 : i64, tpu.core_type = #tpu.core_type<tc>} {
    %c0 = arith.constant 0 : index
    %c0_0 = arith.constant 0 : index
    %c0_1 = arith.constant 0 : index
    %0 = vector.load %arg0[%c0, %c0_0, %c0_1] : memref<2x8x32xf32, #tpu.memory_space<vmem>>, vector<2x8x32xf32>
    %1 = vector.shape_cast %0 : vector<2x8x32xf32> to vector<16x32xf32>
    %c0_2 = arith.constant 0 : index
    %c0_3 = arith.constant 0 : index
    %c0_4 = arith.constant 0 : index
    %2 = vector.load %arg1[%c0_2, %c0_3, %c0_4] : memref<2x8x32xf32, #tpu.memory_space<vmem>>, vector<2x8x32xf32>
    %3 = vector.shape_cast %2 : vector<2x8x32xf32> to vector<16x32xf32>
    %c0_5 = arith.constant 0 : index
    %c0_6 = arith.constant 0 : index
    %c0_7 = arith.constant 0 : index
    %4 = vector.load %arg2[%c0_5, %c0_6, %c0_7] : memref<2x32x96xf32, #tpu.memory_space<vmem>>, vector<1x32x96xf32>
    %5 = vector.shape_cast %4 : vector<1x32x96xf32> to vector<32x96xf32>
    %cst = arith.constant dense<0.000000e+00> : vector<16x96xf32>
    %6 = tpu.matmul %1, %5, %cst {dimension_numbers = #tpu.dot_dimension_numbers<[1], [0], [0], [1], [0, 0, 1, 1], [], []>} : vector<16x32xf32>, vector<32x96xf32>, vector<16x96xf32> -> vector<16x96xf32>
    %c0_8 = arith.constant 0 : index
    %c0_9 = arith.constant 0 : index
    %c0_10 = arith.constant 0 : index
    %7 = vector.load %arg3[%c0_8, %c0_9, %c0_10] : memref<2x1x96xf32, #tpu.memory_space<vmem>>, vector<1x1x96xf32>
    %8 = vector.shape_cast %7 : vector<1x1x96xf32> to vector<1x96xf32>
    %9 = vector.broadcast %8 : vector<1x96xf32> to vector<16x96xf32>
    %10 = arith.addf %6, %9 : vector<16x96xf32>
    %c1 = arith.constant 1 : index
    %c0_11 = arith.constant 0 : index
    %c0_12 = arith.constant 0 : index
    %11 = vector.load %arg2[%c1, %c0_11, %c0_12] : memref<2x32x96xf32, #tpu.memory_space<vmem>>, vector<1x32x96xf32>
    %12 = vector.shape_cast %11 : vector<1x32x96xf32> to vector<32x96xf32>
    %cst_13 = arith.constant dense<0.000000e+00> : vector<16x96xf32>
    %13 = tpu.matmul %3, %12, %cst_13 {dimension_numbers = #tpu.dot_dimension_numbers<[1], [0], [0], [1], [0, 0, 1, 1], [], []>} : vector<16x32xf32>, vector<32x96xf32>, vector<16x96xf32> -> vector<16x96xf32>
    %c1_14 = arith.constant 1 : index
    %c0_15 = arith.constant 0 : index
    %c0_16 = arith.constant 0 : index
    %14 = vector.load %arg3[%c1_14, %c0_15, %c0_16] : memref<2x1x96xf32, #tpu.memory_space<vmem>>, vector<1x1x96xf32>
    %15 = vector.shape_cast %14 : vector<1x1x96xf32> to vector<1x96xf32>
    %16 = vector.broadcast %15 : vector<1x96xf32> to vector<16x96xf32>
    %17 = arith.addf %13, %16 : vector<16x96xf32>
    %18 = vector.extract_strided_slice %10 {offsets = [0, 0], sizes = [16, 32], strides = [1, 1]} : vector<16x96xf32> to vector<16x32xf32>
    %19 = vector.shape_cast %18 : vector<16x32xf32> to vector<2x8x32xf32>
    %20 = vector.extract_strided_slice %10 {offsets = [0, 32], sizes = [16, 32], strides = [1, 1]} : vector<16x96xf32> to vector<16x32xf32>
    %21 = vector.shape_cast %20 : vector<16x32xf32> to vector<2x8x32xf32>
    %22 = vector.extract_strided_slice %10 {offsets = [0, 64], sizes = [16, 32], strides = [1, 1]} : vector<16x96xf32> to vector<16x32xf32>
    %23 = vector.shape_cast %22 : vector<16x32xf32> to vector<2x8x32xf32>
    %24 = vector.extract_strided_slice %17 {offsets = [0, 0], sizes = [16, 32], strides = [1, 1]} : vector<16x96xf32> to vector<16x32xf32>
    %25 = vector.shape_cast %24 : vector<16x32xf32> to vector<2x8x32xf32>
    %26 = vector.extract_strided_slice %17 {offsets = [0, 32], sizes = [16, 32], strides = [1, 1]} : vector<16x96xf32> to vector<16x32xf32>
    %27 = vector.shape_cast %26 : vector<16x32xf32> to vector<2x8x32xf32>
    %28 = vector.extract_strided_slice %17 {offsets = [0, 64], sizes = [16, 32], strides = [1, 1]} : vector<16x96xf32> to vector<16x32xf32>
    %29 = vector.shape_cast %28 : vector<16x32xf32> to vector<2x8x32xf32>
    "tpu.trace_start"() <{level = 10 : i32, message = "bqd,bkd->bqk"}> : () -> ()
    %cst_17 = arith.constant dense<0.000000e+00> : vector<2x8x8xf32>
    %30 = tpu.matmul %19, %27, %cst_17 {dimension_numbers = #tpu.dot_dimension_numbers<[2], [2], [1], [1], [0, 0, 0, 1, 1, 1], [0], [0]>} : vector<2x8x32xf32>, vector<2x8x32xf32>, vector<2x8x8xf32> -> vector<2x8x8xf32>
    "tpu.trace_stop"() : () -> ()
    %cst_18 = arith.constant 0.176776692 : f32
    %31 = vector.broadcast %cst_18 : f32 to vector<2x8x8xf32>
    %32 = arith.mulf %30, %31 : vector<2x8x8xf32>
    %cst_19 = arith.constant dense<0xFF800000> : vector<2x8xf32>
    %33 = vector.multi_reduction <maximumf>, %32, %cst_19 [2] : vector<2x8x8xf32> to vector<2x8xf32>
    %34 = vector.shape_cast %33 : vector<2x8xf32> to vector<2x8x1xf32>
    %35 = vector.broadcast %34 : vector<2x8x1xf32> to vector<2x8x8xf32>
    %36 = arith.subf %32, %35 : vector<2x8x8xf32>
    %37 = math.exp %36 : vector<2x8x8xf32>
    %cst_20 = arith.constant dense<0.000000e+00> : vector<2x8xf32>
    %38 = vector.multi_reduction <add>, %37, %cst_20 [2] : vector<2x8x8xf32> to vector<2x8xf32>
    %39 = vector.shape_cast %38 : vector<2x8xf32> to vector<2x8x1xf32>
    %40 = tpu.reciprocal %39 {approx = true} : vector<2x8x1xf32> -> vector<2x8x1xf32>
    %41 = vector.broadcast %40 : vector<2x8x1xf32> to vector<2x8x8xf32>
    %42 = arith.mulf %37, %41 : vector<2x8x8xf32>
    "tpu.trace_start"() <{level = 10 : i32, message = "bqk,bkd->bqd"}> : () -> ()
    %cst_21 = arith.constant dense<0.000000e+00> : vector<2x8x32xf32>
    %43 = tpu.matmul %42, %29, %cst_21 {dimension_numbers = #tpu.dot_dimension_numbers<[2], [1], [1], [2], [0, 0, 0, 1, 1, 2], [0], [0]>} : vector<2x8x8xf32>, vector<2x8x32xf32>, vector<2x8x32xf32> -> vector<2x8x32xf32>
    "tpu.trace_stop"() : () -> ()
    %44 = vector.shape_cast %43 : vector<2x8x32xf32> to vector<16x32xf32>
    "tpu.trace_start"() <{level = 10 : i32, message = "bqd,bkd->bqk"}> : () -> ()
    %cst_22 = arith.constant dense<0.000000e+00> : vector<2x8x8xf32>
    %45 = tpu.matmul %25, %21, %cst_22 {dimension_numbers = #tpu.dot_dimension_numbers<[2], [2], [1], [1], [0, 0, 0, 1, 1, 1], [0], [0]>} : vector<2x8x32xf32>, vector<2x8x32xf32>, vector<2x8x8xf32> -> vector<2x8x8xf32>
    "tpu.trace_stop"() : () -> ()
    %cst_23 = arith.constant 0.176776692 : f32
    %46 = vector.broadcast %cst_23 : f32 to vector<2x8x8xf32>
    %47 = arith.mulf %45, %46 : vector<2x8x8xf32>
    %cst_24 = arith.constant dense<0xFF800000> : vector<2x8xf32>
    %48 = vector.multi_reduction <maximumf>, %47, %cst_24 [2] : vector<2x8x8xf32> to vector<2x8xf32>
    %49 = vector.shape_cast %48 : vector<2x8xf32> to vector<2x8x1xf32>
    %50 = vector.broadcast %49 : vector<2x8x1xf32> to vector<2x8x8xf32>
    %51 = arith.subf %47, %50 : vector<2x8x8xf32>
    %52 = math.exp %51 : vector<2x8x8xf32>
    %cst_25 = arith.constant dense<0.000000e+00> : vector<2x8xf32>
    %53 = vector.multi_reduction <add>, %52, %cst_25 [2] : vector<2x8x8xf32> to vector<2x8xf32>
    %54 = vector.shape_cast %53 : vector<2x8xf32> to vector<2x8x1xf32>
    %55 = tpu.reciprocal %54 {approx = true} : vector<2x8x1xf32> -> vector<2x8x1xf32>
    %56 = vector.broadcast %55 : vector<2x8x1xf32> to vector<2x8x8xf32>
    %57 = arith.mulf %52, %56 : vector<2x8x8xf32>
    "tpu.trace_start"() <{level = 10 : i32, message = "bqk,bkd->bqd"}> : () -> ()
    %cst_26 = arith.constant dense<0.000000e+00> : vector<2x8x32xf32>
    %58 = tpu.matmul %57, %23, %cst_26 {dimension_numbers = #tpu.dot_dimension_numbers<[2], [1], [1], [2], [0, 0, 0, 1, 1, 2], [0], [0]>} : vector<2x8x8xf32>, vector<2x8x32xf32>, vector<2x8x32xf32> -> vector<2x8x32xf32>
    "tpu.trace_stop"() : () -> ()
    %59 = vector.shape_cast %58 : vector<2x8x32xf32> to vector<16x32xf32>
    %c0_27 = arith.constant 0 : index
    %c0_28 = arith.constant 0 : index
    %c0_29 = arith.constant 0 : index
    %60 = vector.load %arg4[%c0_27, %c0_28, %c0_29] : memref<4x32x32xf32, #tpu.memory_space<vmem>>, vector<1x32x32xf32>
    %61 = vector.shape_cast %60 : vector<1x32x32xf32> to vector<32x32xf32>
    %cst_30 = arith.constant dense<0.000000e+00> : vector<16x32xf32>
    %62 = tpu.matmul %1, %61, %cst_30 {dimension_numbers = #tpu.dot_dimension_numbers<[1], [0], [0], [1], [0, 0, 1, 1], [], []>} : vector<16x32xf32>, vector<32x32xf32>, vector<16x32xf32> -> vector<16x32xf32>
    %c1_31 = arith.constant 1 : index
    %c0_32 = arith.constant 0 : index
    %c0_33 = arith.constant 0 : index
    %63 = vector.load %arg4[%c1_31, %c0_32, %c0_33] : memref<4x32x32xf32, #tpu.memory_space<vmem>>, vector<1x32x32xf32>
    %64 = vector.shape_cast %63 : vector<1x32x32xf32> to vector<32x32xf32>
    %cst_34 = arith.constant dense<0.000000e+00> : vector<16x32xf32>
    %65 = tpu.matmul %44, %64, %cst_34 {dimension_numbers = #tpu.dot_dimension_numbers<[1], [0], [0], [1], [0, 0, 1, 1], [], []>} : vector<16x32xf32>, vector<32x32xf32>, vector<16x32xf32> -> vector<16x32xf32>
    %66 = arith.addf %62, %65 : vector<16x32xf32>
    %c0_35 = arith.constant 0 : index
    %c0_36 = arith.constant 0 : index
    %c0_37 = arith.constant 0 : index
    %67 = vector.load %arg5[%c0_35, %c0_36, %c0_37] : memref<2x1x32xf32, #tpu.memory_space<vmem>>, vector<1x1x32xf32>
    %68 = vector.shape_cast %67 : vector<1x1x32xf32> to vector<1x32xf32>
    %69 = vector.broadcast %68 : vector<1x32xf32> to vector<16x32xf32>
    %70 = arith.addf %66, %69 : vector<16x32xf32>
    %71 = vector.shape_cast %70 : vector<16x32xf32> to vector<2x8x32xf32>
    %c2 = arith.constant 2 : index
    %c0_38 = arith.constant 0 : index
    %c0_39 = arith.constant 0 : index
    %72 = vector.load %arg4[%c2, %c0_38, %c0_39] : memref<4x32x32xf32, #tpu.memory_space<vmem>>, vector<1x32x32xf32>
    %73 = vector.shape_cast %72 : vector<1x32x32xf32> to vector<32x32xf32>
    %cst_40 = arith.constant dense<0.000000e+00> : vector<16x32xf32>
    %74 = tpu.matmul %3, %73, %cst_40 {dimension_numbers = #tpu.dot_dimension_numbers<[1], [0], [0], [1], [0, 0, 1, 1], [], []>} : vector<16x32xf32>, vector<32x32xf32>, vector<16x32xf32> -> vector<16x32xf32>
    %c3 = arith.constant 3 : index
    %c0_41 = arith.constant 0 : index
    %c0_42 = arith.constant 0 : index
    %75 = vector.load %arg4[%c3, %c0_41, %c0_42] : memref<4x32x32xf32, #tpu.memory_space<vmem>>, vector<1x32x32xf32>
    %76 = vector.shape_cast %75 : vector<1x32x32xf32> to vector<32x32xf32>
    %cst_43 = arith.constant dense<0.000000e+00> : vector<16x32xf32>
    %77 = tpu.matmul %59, %76, %cst_43 {dimension_numbers = #tpu.dot_dimension_numbers<[1], [0], [0], [1], [0, 0, 1, 1], [], []>} : vector<16x32xf32>, vector<32x32xf32>, vector<16x32xf32> -> vector<16x32xf32>
    %78 = arith.addf %74, %77 : vector<16x32xf32>
    %c1_44 = arith.constant 1 : index
    %c0_45 = arith.constant 0 : index
    %c0_46 = arith.constant 0 : index
    %79 = vector.load %arg5[%c1_44, %c0_45, %c0_46] : memref<2x1x32xf32, #tpu.memory_space<vmem>>, vector<1x1x32xf32>
    %80 = vector.shape_cast %79 : vector<1x1x32xf32> to vector<1x32xf32>
    %81 = vector.broadcast %80 : vector<1x32xf32> to vector<16x32xf32>
    %82 = arith.addf %78, %81 : vector<16x32xf32>
    %83 = vector.shape_cast %82 : vector<16x32xf32> to vector<2x8x32xf32>
    %c0_47 = arith.constant 0 : index
    %c0_48 = arith.constant 0 : index
    %c0_49 = arith.constant 0 : index
    %84 = vector.load %arg6[%c0_47, %c0_48, %c0_49] : memref<2x16x32xf32, #tpu.memory_space<vmem>>, vector<2x8x32xf32>
    tpu.vector_store %arg6[%c0_47, %c0_48, %c0_49], %71 {strides = array<i32>} : memref<2x16x32xf32, #tpu.memory_space<vmem>>, vector<2x8x32xf32>,
    %c0_50 = arith.constant 0 : index
    %c8 = arith.constant 8 : index
    %c0_51 = arith.constant 0 : index
    %85 = vector.load %arg6[%c0_50, %c8, %c0_51] : memref<2x16x32xf32, #tpu.memory_space<vmem>>, vector<2x8x32xf32>
    tpu.vector_store %arg6[%c0_50, %c8, %c0_51], %83 {strides = array<i32>} : memref<2x16x32xf32, #tpu.memory_space<vmem>>, vector<2x8x32xf32>,
    return
  }
}

</mosaic_0001>

<llo_original>
// kernel: tpu_custom_call.1
$region0: #{tpu_custom_call.1}
  #allocation0 [shape = 'u32[]', space=smem, size = 0x4, offset = 0x4, fixed_abs, tag = 'smem constant byte address 0x4 - core index']
  #allocation1 [shape = 'u32[144,128]{1,0:T(1,128)}', space=vmem, size = 0x12000, scoped, tag = 'internal scratch']
  %s0 = inlined_call_operand.hbm [shape: f32[2,8,32], index: 0, kind: input, shape index: {}]
  %s1 = inlined_call_operand.hbm [shape: f32[2,8,32], index: 1, kind: input, shape index: {}]
  %s2 = inlined_call_operand.hbm [shape: f32[2,32,96], index: 2, kind: input, shape index: {}]
  %s3 = inlined_call_operand.vmem [shape: f32[2,1,96], index: 3, kind: input, shape index: {}]
  %s4 = inlined_call_operand.hbm [shape: f32[4,32,32], index: 4, kind: input, shape index: {}]
  %s5 = inlined_call_operand.vmem [shape: f32[2,1,32], index: 5, kind: input, shape index: {}]
  %s6 = inlined_call_operand.hbm [shape: f32[2,16,32], index: 6, kind: output, shape index: {}]
  %s7 = sld [smem:[#allocation0]]
  $region50: #{tpu_custom_call.1} parent=0
    _
  %s9 = ssub.s32 1, %s7
  %s10 = scalar_select 0, %s9, %s7
  $region1: #{tpu_custom_call.1} parent=0
    #allocation2 [shape = 'u8[8192]{0}', space=vmem, size = 0x2000, scoped, tag = 'input window, operand 0, single buffered']
    #allocation3 [shape = 's32[1]{0}', space=sflag, size = 0x4, scoped, tag = 'scoped memory for tpu_custom_call.1']
    #allocation4 [shape = 's32[1]{0}', space=sflag, size = 0x4, scoped, tag = 'scoped memory for tpu_custom_call.1']
    #allocation5 [shape = 'u8[8192]{0}', space=vmem, size = 0x2000, scoped, tag = 'input window, operand 1, single buffered']
    #allocation6 [shape = 's32[1]{0}', space=sflag, size = 0x4, scoped, tag = 'scoped memory for tpu_custom_call.1']
    #allocation7 [shape = 'u8[32768]{0}', space=vmem, size = 0x8000, scoped, tag = 'input window, operand 2, single buffered']
    #allocation8 [shape = 'u8[65536]{0}', space=vmem, size = 0x10000, scoped, tag = 'input window, operand 4, single buffered']
    #allocation9 [shape = 's32[1]{0}', space=sflag, size = 0x4, scoped, tag = 'scoped memory for tpu_custom_call.1']
    #allocation10 [shape = 'u8[16384]{0}', space=vmem, size = 0x4000, scoped, tag = 'output window, operand 0, single buffered']
    %11 = vsyncpa [#allocation3], 0
    %12 = vsyncpa [#allocation6], 0
    %13 = vsyncpa [#allocation9], 0
    %14 = vsyncpa [#allocation4], 0
    // Predicated region
    $region2: #{tpu_custom_call.1} parent=1 // pred_check
      _
    $region3: #{tpu_custom_call.1} parent=1 // pred_check_branch
      %16 = sbr.rel (0) target = $region5
    $region4: #{tpu_custom_call.1} parent=1 // pred_region
      %s18 = ssub.s32 256, 256
      %19 = vsyncadd [#allocation3], %s18
      %s20 = sshll.u32 [#allocation2], 4
      %s21 = int_to_ptr.vmem [resolvable:$true] %s20
      %26 = dma.hbm_to_vmem [thread:$0]  %s0, 256, %s21, [#allocation3], 128, 128, 8
    $region5: #{tpu_custom_call.1} parent=1 // pred_fallthru
      _
    // Predicated region
    $region6: #{tpu_custom_call.1} parent=1 // pred_check
      _
    $region7: #{tpu_custom_call.1} parent=1 // pred_check_branch
      %28 = sbr.rel (0) target = $region9
    $region8: #{tpu_custom_call.1} parent=1 // pred_region
      %s30 = ssub.s32 256, 256
      %31 = vsyncadd [#allocation6], %s30
      %s32 = sshll.u32 [#allocation5], 4
      %s33 = int_to_ptr.vmem [resolvable:$true] %s32
      %38 = dma.hbm_to_vmem [thread:$0]  %s1, 256, %s33, [#allocation6], 128, 128, 8
    $region9: #{tpu_custom_call.1} parent=1 // pred_fallthru
      _
    // Predicated region
    $region10: #{tpu_custom_call.1} parent=1 // pred_check
      _
    $region11: #{tpu_custom_call.1} parent=1 // pred_check_branch
      %40 = sbr.rel (0) target = $region13
    $region12: #{tpu_custom_call.1} parent=1 // pred_region
      %s42 = ssub.s32 1024, 1024
      %43 = vsyncadd [#allocation6], %s42
      %s44 = sshll.u32 [#allocation7], 4
      %s45 = int_to_ptr.vmem [resolvable:$true] %s44
      %50 = dma.hbm_to_vmem [thread:$0]  %s2, 1024, %s45, [#allocation6], 128, 128, 8
    $region13: #{tpu_custom_call.1} parent=1 // pred_fallthru
      _
    // Predicated region
    $region14: #{tpu_custom_call.1} parent=1 // pred_check
      _
    $region15: #{tpu_custom_call.1} parent=1 // pred_check_branch
      %52 = sbr.rel (0) target = $region17
    $region16: #{tpu_custom_call.1} parent=1 // pred_region
      _
    $region17: #{tpu_custom_call.1} parent=1 // pred_fallthru
      _
    // Predicated region
    $region18: #{tpu_custom_call.1} parent=1 // pred_check
      _
    $region19: #{tpu_custom_call.1} parent=1 // pred_check_branch
      %54 = sbr.rel (0) target = $region21
    $region20: #{tpu_custom_call.1} parent=1 // pred_region
      %s56 = ssub.s32 2048, 2048
      %57 = vsyncadd [#allocation9], %s56
      %s58 = sshll.u32 [#allocation8], 4
      %s59 = int_to_ptr.vmem [resolvable:$true] %s58
      %64 = dma.hbm_to_vmem [thread:$0]  %s4, 2048, %s59, [#allocation9], 128, 128, 8
    $region21: #{tpu_custom_call.1} parent=1 // pred_fallthru
      _
    // Predicated region
    $region22: #{tpu_custom_call.1} parent=1 // pred_check
      _
    $region23: #{tpu_custom_call.1} parent=1 // pred_check_branch
      %66 = sbr.rel (0) target = $region25
    $region24: #{tpu_custom_call.1} parent=1 // pred_region
      _
    $region25: #{tpu_custom_call.1} parent=1 // pred_fallthru
      _
    // Predicated region
    $region26: #{tpu_custom_call.1} parent=1 // pred_check
      _
    $region27: #{tpu_custom_call.1} parent=1 // pred_check_branch
      %68 = sbr.rel (0) target = $region29
    $region28: #{tpu_custom_call.1} parent=1 // pred_region
      %69 = dma.done [#allocation3], 256
    $region29: #{tpu_custom_call.1} parent=1 // pred_fallthru
      _
    // Predicated region
    $region30: #{tpu_custom_call.1} parent=1 // pred_check
      _
    $region31: #{tpu_custom_call.1} parent=1 // pred_check_branch
      %71 = sbr.rel (0) target = $region33
    $region32: #{tpu_custom_call.1} parent=1 // pred_region
      %72 = dma.done [#allocation6], 256
    $region33: #{tpu_custom_call.1} parent=1 // pred_fallthru
      _
    // Predicated region
    $region34: #{tpu_custom_call.1} parent=1 // pred_check
      _
    $region35: #{tpu_custom_call.1} parent=1 // pred_check_branch
      %74 = sbr.rel (0) target = $region37
    $region36: #{tpu_custom_call.1} parent=1 // pred_region
      %75 = dma.done [#allocation6], 1024
    $region37: #{tpu_custom_call.1} parent=1 // pred_fallthru
      _
    // Predicated region
    $region38: #{tpu_custom_call.1} parent=1 // pred_check
      _
    $region39: #{tpu_custom_call.1} parent=1 // pred_check_branch
      %77 = sbr.rel (0) target = $region41
    $region40: #{tpu_custom_call.1} parent=1 // pred_region
      %78 = dma.done [#allocation9], 2048
    $region41: #{tpu_custom_call.1} parent=1 // pred_fallthru
      _
    %v79 = vld [vmem:[#allocation2] sm:$0xff]
    %v80 = vld [vmem:[#allocation2 + $0x8] sm:$0xff]
    %v81 = vld [vmem:[#allocation5] sm:$0xff]
    %v82 = vld [vmem:[#allocation5 + $0x8] sm:$0xff]
    %v83 = vld [vmem:[#allocation7] sm:$0xff]
    %v84 = vld [vmem:[#allocation7 + $0x8] sm:$0xff]
    %v85 = vld [vmem:[#allocation7 + $0x10] sm:$0xff]
    %v86 = vld [vmem:[#allocation7 + $0x18] sm:$0xff]
    %v87 = vld [vmem:[%s3] sm:$0x1]
    %v89 = vlaneseq
    %v90 = vshrl.u32 %v89, 7
    %v91 = vsub.s32 0, %v90
    %v92 = vrot.slane %v87, %v91
    %vm94 = vcmask 261120
    %v96 = vsel %vm94, %v79, 0
    %v99 = vsel %vm94, %v80, 0
    %101 = vmatprep.subr.mxu0 0.0
    %102 = vmatpush1.msra.mxu0 0.0
    %103 = vmatprep.subr.mxu0 0.0
    %104 = vmatpush1.msra.mxu0 0.0
    %105 = vmatprep.subr.mxu0 0.0
    %106 = vmatpush1.msra.mxu0 0.0
    %107 = vmatprep.subr.mxu0 0.0
    %108 = vmatpush1.msra.mxu0 0.0
    %109 = vmatprep.subr.mxu0 0.0
    %110 = vmatpush1.msra.mxu0 0.0
    %111 = vmatprep.subr.mxu0 0.0
    %112 = vmatpush1.msra.mxu0 0.0
    %113 = vmatprep.subr.mxu0 0.0
    %114 = vmatpush1.msra.mxu0 0.0
    %115 = vmatprep.subr.mxu0 0.0
    %116 = vmatpush1.msra.mxu0 0.0
    %117 = vmatprep.subr.mxu0 0.0
    %118 = vmatpush1.msra.mxu0 0.0
    %119 = vmatprep.subr.mxu0 0.0
    %120 = vmatpush1.msra.mxu0 0.0
    %121 = vmatprep.subr.mxu0 0.0
    %122 = vmatpush1.msra.mxu0 0.0
    %123 = vmatprep.subr.mxu0 0.0
    %124 = vmatpush1.msra.mxu0 0.0
    %125 = vmatprep.subr.mxu0 0.0
    %126 = vmatpush1.msra.mxu0 %v86
    %127 = vmatprep.subr.mxu0 0.0
    %128 = vmatpush1.msra.mxu0 %v85
    %129 = vmatprep.subr.mxu0 0.0
    %130 = vmatpush1.msra.mxu0 %v84
    %131 = vmatprep.subr.mxu0 0.0
    %132 = vmatpush1.msra.mxu0 %v83
    %133 = vmatprep.subr.mxu0 0.0
    %134 = vmatpush2.msra.mxu0 0.0
    %135 = vmatprep.subr.mxu0 0.0
    %136 = vmatpush2.msra.mxu0 0.0
    %137 = vmatprep.subr.mxu0 0.0
    %138 = vmatpush2.msra.mxu0 0.0
    %139 = vmatprep.subr.mxu0 0.0
    %140 = vmatpush2.msra.mxu0 0.0
    %141 = vmatprep.subr.mxu0 0.0
    %142 = vmatpush2.msra.mxu0 0.0
    %143 = vmatprep.subr.mxu0 0.0
    %144 = vmatpush2.msra.mxu0 0.0
    %145 = vmatprep.subr.mxu0 0.0
    %146 = vmatpush2.msra.mxu0 0.0
    %147 = vmatprep.subr.mxu0 0.0
    %148 = vmatpush2.msra.mxu0 0.0
    %149 = vmatprep.subr.mxu0 0.0
    %150 = vmatpush2.msra.mxu0 0.0
    %151 = vmatprep.subr.mxu0 0.0
    %152 = vmatpush2.msra.mxu0 0.0
    %153 = vmatprep.subr.mxu0 0.0
    %154 = vmatpush2.msra.mxu0 0.0
    %155 = vmatprep.subr.mxu0 0.0
    %156 = vmatpush2.msra.mxu0 0.0
    %157 = vmatprep.subr.mxu0 0.0
    %158 = vmatpush2.msra.mxu0 0.0
    %159 = vmatprep.subr.mxu0 0.0
    %160 = vmatpush2.msra.mxu0 0.0
    %161 = vmatprep.subr.mxu0 0.0
    %162 = vmatpush2.msra.mxu0 0.0
    %163 = vmatprep.subr.mxu0 0.0
    %164 = vmatpush2.msra.mxu0 0.0
    %165 = vmatprep.mubr.f32.mxu0 0.0
    %166 = vmatmul.mubr.f32.gmra.mxu0 %v96
    %v167 = vpop.f32.mrf.mxu0
    %v168 = vadd.f32 %v92, %v167
    %v169 = vpop.f32.mrf.mxu0
    %170 = vmatprep.mubr.f32.mxu0 0.0
    %171 = vmatmul.mubr.f32.gmra.mxu0 %v99
    %v172 = vpop.f32.mrf.mxu0
    %v173 = vadd.f32 %v92, %v172
    %v174 = vpop.f32.mrf.mxu0
    %175 = vdwg.mxu0
    %s176 = scalar_lea.vmem [#allocation7], 32
    %v177 = vld [vmem:[%s176] sm:$0xff]
    %v178 = vld [vmem:[%s176 + $0x8] sm:$0xff]
    %v179 = vld [vmem:[%s176 + $0x10] sm:$0xff]
    %v180 = vld [vmem:[%s176 + $0x18] sm:$0xff]
    %s181 = scalar_lea.vmem %s3, 1
    %v182 = vld [vmem:[%s181] sm:$0x1]
    %v184 = vlaneseq
    %v185 = vshrl.u32 %v184, 7
    %v186 = vsub.s32 0, %v185
    %v187 = vrot.slane %v182, %v186
    %v190 = vsel %vm94, %v81, 0
    %v193 = vsel %vm94, %v82, 0
    %195 = vmatprep.subr.mxu0 0.0
    %196 = vmatpush1.msra.mxu0 0.0
    %197 = vmatprep.subr.mxu0 0.0
    %198 = vmatpush1.msra.mxu0 0.0
    %199 = vmatprep.subr.mxu0 0.0
    %200 = vmatpush1.msra.mxu0 0.0
    %201 = vmatprep.subr.mxu0 0.0
    %202 = vmatpush1.msra.mxu0 0.0
    %203 = vmatprep.subr.mxu0 0.0
    %204 = vmatpush1.msra.mxu0 0.0
    %205 = vmatprep.subr.mxu0 0.0
    %206 = vmatpush1.msra.mxu0 0.0
    %207 = vmatprep.subr.mxu0 0.0
    %208 = vmatpush1.msra.mxu0 0.0
    %209 = vmatprep.subr.mxu0 0.0
    %210 = vmatpush1.msra.mxu0 0.0
    %211 = vmatprep.subr.mxu0 0.0
    %212 = vmatpush1.msra.mxu0 0.0
    %213 = vmatprep.subr.mxu0 0.0
    %214 = vmatpush1.msra.mxu0 0.0
    %215 = vmatprep.subr.mxu0 0.0
    %216 = vmatpush1.msra.mxu0 0.0
    %217 = vmatprep.subr.mxu0 0.0
    %218 = vmatpush1.msra.mxu0 0.0
    %219 = vmatprep.subr.mxu0 0.0
    %220 = vmatpush1.msra.mxu0 %v180
    %221 = vmatprep.subr.mxu0 0.0
    %222 = vmatpush1.msra.mxu0 %v179
    %223 = vmatprep.subr.mxu0 0.0
    %224 = vmatpush1.msra.mxu0 %v178
    %225 = vmatprep.subr.mxu0 0.0
    %226 = vmatpush1.msra.mxu0 %v177
    %227 = vmatprep.subr.mxu0 0.0
    %228 = vmatpush2.msra.mxu0 0.0
    %229 = vmatprep.subr.mxu0 0.0
    %230 = vmatpush2.msra.mxu0 0.0
    %231 = vmatprep.subr.mxu0 0.0
    %232 = vmatpush2.msra.mxu0 0.0
    %233 = vmatprep.subr.mxu0 0.0
    %234 = vmatpush2.msra.mxu0 0.0
    %235 = vmatprep.subr.mxu0 0.0
    %236 = vmatpush2.msra.mxu0 0.0
    %237 = vmatprep.subr.mxu0 0.0
    %238 = vmatpush2.msra.mxu0 0.0
    %239 = vmatprep.subr.mxu0 0.0
    %240 = vmatpush2.msra.mxu0 0.0
    %241 = vmatprep.subr.mxu0 0.0
    %242 = vmatpush2.msra.mxu0 0.0
    %243 = vmatprep.subr.mxu0 0.0
    %244 = vmatpush2.msra.mxu0 0.0
    %245 = vmatprep.subr.mxu0 0.0
    %246 = vmatpush2.msra.mxu0 0.0
    %247 = vmatprep.subr.mxu0 0.0
    %248 = vmatpush2.msra.mxu0 0.0
    %249 = vmatprep.subr.mxu0 0.0
    %250 = vmatpush2.msra.mxu0 0.0
    %251 = vmatprep.subr.mxu0 0.0
    %252 = vmatpush2.msra.mxu0 0.0
    %253 = vmatprep.subr.mxu0 0.0
    %254 = vmatpush2.msra.mxu0 0.0
    %255 = vmatprep.subr.mxu0 0.0
    %256 = vmatpush2.msra.mxu0 0.0
    %257 = vmatprep.subr.mxu0 0.0
    %258 = vmatpush2.msra.mxu0 0.0
    %259 = vmatprep.mubr.f32.mxu0 0.0
    %260 = vmatmul.mubr.f32.gmra.mxu0 %v190
    %v261 = vpop.f32.mrf.mxu0
    %v262 = vadd.f32 %v187, %v261
    %v263 = vpop.f32.mrf.mxu0
    %264 = vmatprep.mubr.f32.mxu0 0.0
    %265 = vmatmul.mubr.f32.gmra.mxu0 %v193
    %v266 = vpop.f32.mrf.mxu0
    %v267 = vadd.f32 %v187, %v266
    %v268 = vpop.f32.mrf.mxu0
    %269 = vdwg.mxu0
    %271 = vrot.lane.b32.xlu0 %v262, 96
    %v272 = vpop.permute.xlu0 %271
    %v274 = vsel %vm94, %v168, 0
    %v276 = vsel %vm94, %v272, 0
    %278 = vmatprep.subr.mxu0 0.0
    %279 = vmatpush1.xpose.msra.mxu0 0.0
    %280 = vmatprep.subr.mxu0 0.0
    %281 = vmatpush1.xpose.msra.mxu0 0.0
    %282 = vmatprep.subr.mxu0 0.0
    %283 = vmatpush1.xpose.msra.mxu0 0.0
    %284 = vmatprep.subr.mxu0 0.0
    %285 = vmatpush1.xpose.msra.mxu0 0.0
    %286 = vmatprep.subr.mxu0 0.0
    %287 = vmatpush1.xpose.msra.mxu0 0.0
    %288 = vmatprep.subr.mxu0 0.0
    %289 = vmatpush1.xpose.msra.mxu0 0.0
    %290 = vmatprep.subr.mxu0 0.0
    %291 = vmatpush1.xpose.msra.mxu0 0.0
    %292 = vmatprep.subr.mxu0 0.0
    %293 = vmatpush1.xpose.msra.mxu0 0.0
    %294 = vmatprep.subr.mxu0 0.0
    %295 = vmatpush1.xpose.msra.mxu0 0.0
    %296 = vmatprep.subr.mxu0 0.0
    %297 = vmatpush1.xpose.msra.mxu0 0.0
    %298 = vmatprep.subr.mxu0 0.0
    %299 = vmatpush1.xpose.msra.mxu0 0.0
    %300 = vmatprep.subr.mxu0 0.0
    %301 = vmatpush1.xpose.msra.mxu0 0.0
    %302 = vmatprep.subr.mxu0 0.0
    %303 = vmatpush1.xpose.msra.mxu0 0.0
    %304 = vmatprep.subr.mxu0 0.0
    %305 = vmatpush1.xpose.msra.mxu0 0.0
    %306 = vmatprep.subr.mxu0 0.0
    %307 = vmatpush1.xpose.msra.mxu0 0.0
    %308 = vmatprep.subr.mxu0 0.0
    %309 = vmatpush1.xpose.msra.mxu0 %v276
    %310 = vmatprep.subr.mxu0 0.0
    %311 = vmatpush2.xpose.msra.mxu0 0.0
    %312 = vmatprep.subr.mxu0 0.0
    %313 = vmatpush2.xpose.msra.mxu0 0.0
    %314 = vmatprep.subr.mxu0 0.0
    %315 = vmatpush2.xpose.msra.mxu0 0.0
    %316 = vmatprep.subr.mxu0 0.0
    %317 = vmatpush2.xpose.msra.mxu0 0.0
    %318 = vmatprep.subr.mxu0 0.0
    %319 = vmatpush2.xpose.msra.mxu0 0.0
    %320 = vmatprep.subr.mxu0 0.0
    %321 = vmatpush2.xpose.msra.mxu0 0.0
    %322 = vmatprep.subr.mxu0 0.0
    %323 = vmatpush2.xpose.msra.mxu0 0.0
    %324 = vmatprep.subr.mxu0 0.0
    %325 = vmatpush2.xpose.msra.mxu0 0.0
    %326 = vmatprep.subr.mxu0 0.0
    %327 = vmatpush2.xpose.msra.mxu0 0.0
    %328 = vmatprep.subr.mxu0 0.0
    %329 = vmatpush2.xpose.msra.mxu0 0.0
    %330 = vmatprep.subr.mxu0 0.0
    %331 = vmatpush2.xpose.msra.mxu0 0.0
    %332 = vmatprep.subr.mxu0 0.0
    %333 = vmatpush2.xpose.msra.mxu0 0.0
    %334 = vmatprep.subr.mxu0 0.0
    %335 = vmatpush2.xpose.msra.mxu0 0.0
    %336 = vmatprep.subr.mxu0 0.0
    %337 = vmatpush2.xpose.msra.mxu0 0.0
    %338 = vmatprep.subr.mxu0 0.0
    %339 = vmatpush2.xpose.msra.mxu0 0.0
    %340 = vmatprep.subr.mxu0 0.0
    %341 = vmatpush2.xpose.msra.mxu0 0.0
    %342 = vmatprep.mubr.f32.mxu0 0.0
    %343 = vmatmul.mubr.f32.gmra.mxu0 %v274
    %v344 = vpop.f32.mrf.mxu0
    %v345 = vadd.f32 0.0, %v344
    %v346 = vpop.f32.mrf.mxu0
    %347 = vdwg.mxu0
    %349 = vrot.lane.b32.xlu0 %v267, 96
    %v350 = vpop.permute.xlu0 %349
    %v352 = vsel %vm94, %v173, 0
    %v354 = vsel %vm94, %v350, 0
    %356 = vmatprep.subr.mxu0 0.0
    %357 = vmatpush1.xpose.msra.mxu0 0.0
    %358 = vmatprep.subr.mxu0 0.0
    %359 = vmatpush1.xpose.msra.mxu0 0.0
    %360 = vmatprep.subr.mxu0 0.0
    %361 = vmatpush1.xpose.msra.mxu0 0.0
    %362 = vmatprep.subr.mxu0 0.0
    %363 = vmatpush1.xpose.msra.mxu0 0.0
    %364 = vmatprep.subr.mxu0 0.0
    %365 = vmatpush1.xpose.msra.mxu0 0.0
    %366 = vmatprep.subr.mxu0 0.0
    %367 = vmatpush1.xpose.msra.mxu0 0.0
    %368 = vmatprep.subr.mxu0 0.0
    %369 = vmatpush1.xpose.msra.mxu0 0.0
    %370 = vmatprep.subr.mxu0 0.0
    %371 = vmatpush1.xpose.msra.mxu0 0.0
    %372 = vmatprep.subr.mxu0 0.0
    %373 = vmatpush1.xpose.msra.mxu0 0.0
    %374 = vmatprep.subr.mxu0 0.0
    %375 = vmatpush1.xpose.msra.mxu0 0.0
    %376 = vmatprep.subr.mxu0 0.0
    %377 = vmatpush1.xpose.msra.mxu0 0.0
    %378 = vmatprep.subr.mxu0 0.0
    %379 = vmatpush1.xpose.msra.mxu0 0.0
    %380 = vmatprep.subr.mxu0 0.0
    %381 = vmatpush1.xpose.msra.mxu0 0.0
    %382 = vmatprep.subr.mxu0 0.0
    %383 = vmatpush1.xpose.msra.mxu0 0.0
    %384 = vmatprep.subr.mxu0 0.0
    %385 = vmatpush1.xpose.msra.mxu0 0.0
    %386 = vmatprep.subr.mxu0 0.0
    %387 = vmatpush1.xpose.msra.mxu0 %v354
    %388 = vmatprep.subr.mxu0 0.0
    %389 = vmatpush2.xpose.msra.mxu0 0.0
    %390 = vmatprep.subr.mxu0 0.0
    %391 = vmatpush2.xpose.msra.mxu0 0.0
    %392 = vmatprep.subr.mxu0 0.0
    %393 = vmatpush2.xpose.msra.mxu0 0.0
    %394 = vmatprep.subr.mxu0 0.0
    %395 = vmatpush2.xpose.msra.mxu0 0.0
    %396 = vmatprep.subr.mxu0 0.0
    %397 = vmatpush2.xpose.msra.mxu0 0.0
    %398 = vmatprep.subr.mxu0 0.0
    %399 = vmatpush2.xpose.msra.mxu0 0.0
    %400 = vmatprep.subr.mxu0 0.0
    %401 = vmatpush2.xpose.msra.mxu0 0.0
    %402 = vmatprep.subr.mxu0 0.0
    %403 = vmatpush2.xpose.msra.mxu0 0.0
    %404 = vmatprep.subr.mxu0 0.0
    %405 = vmatpush2.xpose.msra.mxu0 0.0
    %406 = vmatprep.subr.mxu0 0.0
    %407 = vmatpush2.xpose.msra.mxu0 0.0
    %408 = vmatprep.subr.mxu0 0.0
    %409 = vmatpush2.xpose.msra.mxu0 0.0
    %410 = vmatprep.subr.mxu0 0.0
    %411 = vmatpush2.xpose.msra.mxu0 0.0
    %412 = vmatprep.subr.mxu0 0.0
    %413 = vmatpush2.xpose.msra.mxu0 0.0
    %414 = vmatprep.subr.mxu0 0.0
    %415 = vmatpush2.xpose.msra.mxu0 0.0
    %416 = vmatprep.subr.mxu0 0.0
    %417 = vmatpush2.xpose.msra.mxu0 0.0
    %418 = vmatprep.subr.mxu0 0.0
    %419 = vmatpush2.xpose.msra.mxu0 0.0
    %420 = vmatprep.mubr.f32.mxu0 0.0
    %421 = vmatmul.mubr.f32.gmra.mxu0 %v352
    %v422 = vpop.f32.mrf.mxu0
    %v423 = vadd.f32 0.0, %v422
    %v424 = vpop.f32.mrf.mxu0
    %425 = vdwg.mxu0
    %v426 = vmul.f32 %v345, 0.17677669
    %v427 = vmul.f32 %v423, 0.17677669
    %vm428 = vcmask 64512
    %v429 = vsel %vm428, %v426, -inf
    %430 = vmax.xlane.f32.xlu0 %v429
    %v431 = vpop.xlane.xlu0 %430
    %v432 = vsel %vm428, %v427, -inf
    %433 = vmax.xlane.f32.xlu0 %v432
    %v434 = vpop.xlane.xlu0 %433
    %v435 = vsub.f32 %v426, %v431
    %v436 = vsub.f32 %v427, %v434
    %v437 = vmul.f32 %v435, 1.442695
    %v438 = vpow.pop %v437
    %v439 = vmul.f32 %v436, 1.442695
    %v440 = vpow.pop %v439
    %v441 = vsel %vm428, %v438, 0.0
    %442 = vadd.xlane.f32.xlu0 %v441
    %v443 = vpop.xlane.xlu0 %442
    %v444 = vsel %vm428, %v440, 0.0
    %445 = vadd.xlane.f32.xlu0 %v444
    %v446 = vpop.xlane.xlu0 %445
    %v447 = vrcp.pop %v443
    %v448 = vrcp.pop %v446
    %v449 = vmul.f32 %v438, %v447
    %v450 = vmul.f32 %v440, %v448
    %451 = vrot.lane.b32.xlu0 %v262, 64
    %v452 = vpop.permute.xlu0 %451
    %v455 = vsel %vm428, %v449, 0
    %457 = vmatprep.subr.mxu0 0.0
    %458 = vmatpush1.msra.mxu0 0.0
    %459 = vmatprep.subr.mxu0 0.0
    %460 = vmatpush1.msra.mxu0 0.0
    %461 = vmatprep.subr.mxu0 0.0
    %462 = vmatpush1.msra.mxu0 0.0
    %463 = vmatprep.subr.mxu0 0.0
    %464 = vmatpush1.msra.mxu0 0.0
    %465 = vmatprep.subr.mxu0 0.0
    %466 = vmatpush1.msra.mxu0 0.0
    %467 = vmatprep.subr.mxu0 0.0
    %468 = vmatpush1.msra.mxu0 0.0
    %469 = vmatprep.subr.mxu0 0.0
    %470 = vmatpush1.msra.mxu0 0.0
    %471 = vmatprep.subr.mxu0 0.0
    %472 = vmatpush1.msra.mxu0 0.0
    %473 = vmatprep.subr.mxu0 0.0
    %474 = vmatpush1.msra.mxu0 0.0
    %475 = vmatprep.subr.mxu0 0.0
    %476 = vmatpush1.msra.mxu0 0.0
    %477 = vmatprep.subr.mxu0 0.0
    %478 = vmatpush1.msra.mxu0 0.0
    %479 = vmatprep.subr.mxu0 0.0
    %480 = vmatpush1.msra.mxu0 0.0
    %481 = vmatprep.subr.mxu0 0.0
    %482 = vmatpush1.msra.mxu0 0.0
    %483 = vmatprep.subr.mxu0 0.0
    %484 = vmatpush1.msra.mxu0 0.0
    %485 = vmatprep.subr.mxu0 0.0
    %486 = vmatpush1.msra.mxu0 0.0
    %487 = vmatprep.subr.mxu0 0.0
    %488 = vmatpush1.msra.mxu0 %v452
    %489 = vmatprep.subr.mxu0 0.0
    %490 = vmatpush2.msra.mxu0 0.0
    %491 = vmatprep.subr.mxu0 0.0
    %492 = vmatpush2.msra.mxu0 0.0
    %493 = vmatprep.subr.mxu0 0.0
    %494 = vmatpush2.msra.mxu0 0.0
    %495 = vmatprep.subr.mxu0 0.0
    %496 = vmatpush2.msra.mxu0 0.0
    %497 = vmatprep.subr.mxu0 0.0
    %498 = vmatpush2.msra.mxu0 0.0
    %499 = vmatprep.subr.mxu0 0.0
    %500 = vmatpush2.msra.mxu0 0.0
    %501 = vmatprep.subr.mxu0 0.0
    %502 = vmatpush2.msra.mxu0 0.0
    %503 = vmatprep.subr.mxu0 0.0
    %504 = vmatpush2.msra.mxu0 0.0
    %505 = vmatprep.subr.mxu0 0.0
    %506 = vmatpush2.msra.mxu0 0.0
    %507 = vmatprep.subr.mxu0 0.0
    %508 = vmatpush2.msra.mxu0 0.0
    %509 = vmatprep.subr.mxu0 0.0
    %510 = vmatpush2.msra.mxu0 0.0
    %511 = vmatprep.subr.mxu0 0.0
    %512 = vmatpush2.msra.mxu0 0.0
    %513 = vmatprep.subr.mxu0 0.0
    %514 = vmatpush2.msra.mxu0 0.0
    %515 = vmatprep.subr.mxu0 0.0
    %516 = vmatpush2.msra.mxu0 0.0
    %517 = vmatprep.subr.mxu0 0.0
    %518 = vmatpush2.msra.mxu0 0.0
    %519 = vmatprep.subr.mxu0 0.0
    %520 = vmatpush2.msra.mxu0 0.0
    %521 = vmatprep.mubr.f32.mxu0 0.0
    %522 = vmatmul.mubr.f32.gmra.mxu0 %v455
    %v523 = vpop.f32.mrf.mxu0
    %v524 = vadd.f32 0.0, %v523
    %v525 = vpop.f32.mrf.mxu0
    %526 = vdwg.mxu0
    %527 = vrot.lane.b32.xlu0 %v267, 64
    %v528 = vpop.permute.xlu0 %527
    %v531 = vsel %vm428, %v450, 0
    %533 = vmatprep.subr.mxu0 0.0
    %534 = vmatpush1.msra.mxu0 0.0
    %535 = vmatprep.subr.mxu0 0.0
    %536 = vmatpush1.msra.mxu0 0.0
    %537 = vmatprep.subr.mxu0 0.0
    %538 = vmatpush1.msra.mxu0 0.0
    %539 = vmatprep.subr.mxu0 0.0
    %540 = vmatpush1.msra.mxu0 0.0
    %541 = vmatprep.subr.mxu0 0.0
    %542 = vmatpush1.msra.mxu0 0.0
    %543 = vmatprep.subr.mxu0 0.0
    %544 = vmatpush1.msra.mxu0 0.0
    %545 = vmatprep.subr.mxu0 0.0
    %546 = vmatpush1.msra.mxu0 0.0
    %547 = vmatprep.subr.mxu0 0.0
    %548 = vmatpush1.msra.mxu0 0.0
    %549 = vmatprep.subr.mxu0 0.0
    %550 = vmatpush1.msra.mxu0 0.0
    %551 = vmatprep.subr.mxu0 0.0
    %552 = vmatpush1.msra.mxu0 0.0
    %553 = vmatprep.subr.mxu0 0.0
    %554 = vmatpush1.msra.mxu0 0.0
    %555 = vmatprep.subr.mxu0 0.0
    %556 = vmatpush1.msra.mxu0 0.0
    %557 = vmatprep.subr.mxu0 0.0
    %558 = vmatpush1.msra.mxu0 0.0
    %559 = vmatprep.subr.mxu0 0.0
    %560 = vmatpush1.msra.mxu0 0.0
    %561 = vmatprep.subr.mxu0 0.0
    %562 = vmatpush1.msra.mxu0 0.0
    %563 = vmatprep.subr.mxu0 0.0
    %564 = vmatpush1.msra.mxu0 %v528
    %565 = vmatprep.subr.mxu0 0.0
    %566 = vmatpush2.msra.mxu0 0.0
    %567 = vmatprep.subr.mxu0 0.0
    %568 = vmatpush2.msra.mxu0 0.0
    %569 = vmatprep.subr.mxu0 0.0
    %570 = vmatpush2.msra.mxu0 0.0
    %571 = vmatprep.subr.mxu0 0.0
    %572 = vmatpush2.msra.mxu0 0.0
    %573 = vmatprep.subr.mxu0 0.0
    %574 = vmatpush2.msra.mxu0 0.0
    %575 = vmatprep.subr.mxu0 0.0
    %576 = vmatpush2.msra.mxu0 0.0
    %577 = vmatprep.subr.mxu0 0.0
    %578 = vmatpush2.msra.mxu0 0.0
    %579 = vmatprep.subr.mxu0 0.0
    %580 = vmatpush2.msra.mxu0 0.0
    %581 = vmatprep.subr.mxu0 0.0
    %582 = vmatpush2.msra.mxu0 0.0
    %583 = vmatprep.subr.mxu0 0.0
    %584 = vmatpush2.msra.mxu0 0.0
    %585 = vmatprep.subr.mxu0 0.0
    %586 = vmatpush2.msra.mxu0 0.0
    %587 = vmatprep.subr.mxu0 0.0
    %588 = vmatpush2.msra.mxu0 0.0
    %589 = vmatprep.subr.mxu0 0.0
    %590 = vmatpush2.msra.mxu0 0.0
    %591 = vmatprep.subr.mxu0 0.0
    %592 = vmatpush2.msra.mxu0 0.0
    %593 = vmatprep.subr.mxu0 0.0
    %594 = vmatpush2.msra.mxu0 0.0
    %595 = vmatprep.subr.mxu0 0.0
    %596 = vmatpush2.msra.mxu0 0.0
    %597 = vmatprep.mubr.f32.mxu0 0.0
    %598 = vmatmul.mubr.f32.gmra.mxu0 %v531
    %v599 = vpop.f32.mrf.mxu0
    %v600 = vadd.f32 0.0, %v599
    %v601 = vpop.f32.mrf.mxu0
    %602 = vdwg.mxu0
    %603 = vrot.lane.b32.xlu0 %v168, 96
    %v604 = vpop.permute.xlu0 %603
    %v605 = vsel %vm94, %v262, 0
    %v607 = vsel %vm94, %v604, 0
    %609 = vmatprep.subr.mxu0 0.0
    %610 = vmatpush1.xpose.msra.mxu0 0.0
    %611 = vmatprep.subr.mxu0 0.0
    %612 = vmatpush1.xpose.msra.mxu0 0.0
    %613 = vmatprep.subr.mxu0 0.0
    %614 = vmatpush1.xpose.msra.mxu0 0.0
    %615 = vmatprep.subr.mxu0 0.0
    %616 = vmatpush1.xpose.msra.mxu0 0.0
    %617 = vmatprep.subr.mxu0 0.0
    %618 = vmatpush1.xpose.msra.mxu0 0.0
    %619 = vmatprep.subr.mxu0 0.0
    %620 = vmatpush1.xpose.msra.mxu0 0.0
    %621 = vmatprep.subr.mxu0 0.0
    %622 = vmatpush1.xpose.msra.mxu0 0.0
    %623 = vmatprep.subr.mxu0 0.0
    %624 = vmatpush1.xpose.msra.mxu0 0.0
    %625 = vmatprep.subr.mxu0 0.0
    %626 = vmatpush1.xpose.msra.mxu0 0.0
    %627 = vmatprep.subr.mxu0 0.0
    %628 = vmatpush1.xpose.msra.mxu0 0.0
    %629 = vmatprep.subr.mxu0 0.0
    %630 = vmatpush1.xpose.msra.mxu0 0.0
    %631 = vmatprep.subr.mxu0 0.0
    %632 = vmatpush1.xpose.msra.mxu0 0.0
    %633 = vmatprep.subr.mxu0 0.0
    %634 = vmatpush1.xpose.msra.mxu0 0.0
    %635 = vmatprep.subr.mxu0 0.0
    %636 = vmatpush1.xpose.msra.mxu0 0.0
    %637 = vmatprep.subr.mxu0 0.0
    %638 = vmatpush1.xpose.msra.mxu0 0.0
    %639 = vmatprep.subr.mxu0 0.0
    %640 = vmatpush1.xpose.msra.mxu0 %v607
    %641 = vmatprep.subr.mxu0 0.0
    %642 = vmatpush2.xpose.msra.mxu0 0.0
    %643 = vmatprep.subr.mxu0 0.0
    %644 = vmatpush2.xpose.msra.mxu0 0.0
    %645 = vmatprep.subr.mxu0 0.0
    %646 = vmatpush2.xpose.msra.mxu0 0.0
    %647 = vmatprep.subr.mxu0 0.0
    %648 = vmatpush2.xpose.msra.mxu0 0.0
    %649 = vmatprep.subr.mxu0 0.0
    %650 = vmatpush2.xpose.msra.mxu0 0.0
    %651 = vmatprep.subr.mxu0 0.0
    %652 = vmatpush2.xpose.msra.mxu0 0.0
    %653 = vmatprep.subr.mxu0 0.0
    %654 = vmatpush2.xpose.msra.mxu0 0.0
    %655 = vmatprep.subr.mxu0 0.0
    %656 = vmatpush2.xpose.msra.mxu0 0.0
    %657 = vmatprep.subr.mxu0 0.0
    %658 = vmatpush2.xpose.msra.mxu0 0.0
    %659 = vmatprep.subr.mxu0 0.0
    %660 = vmatpush2.xpose.msra.mxu0 0.0
    %661 = vmatprep.subr.mxu0 0.0
    %662 = vmatpush2.xpose.msra.mxu0 0.0
    %663 = vmatprep.subr.mxu0 0.0
    %664 = vmatpush2.xpose.msra.mxu0 0.0
    %665 = vmatprep.subr.mxu0 0.0
    %666 = vmatpush2.xpose.msra.mxu0 0.0
    %667 = vmatprep.subr.mxu0 0.0
    %668 = vmatpush2.xpose.msra.mxu0 0.0
    %669 = vmatprep.subr.mxu0 0.0
    %670 = vmatpush2.xpose.msra.mxu0 0.0
    %671 = vmatprep.subr.mxu0 0.0
    %672 = vmatpush2.xpose.msra.mxu0 0.0
    %673 = vmatprep.mubr.f32.mxu0 0.0
    %674 = vmatmul.mubr.f32.gmra.mxu0 %v605
    %v675 = vpop.f32.mrf.mxu0
    %v676 = vadd.f32 0.0, %v675
    %v677 = vpop.f32.mrf.mxu0
    %678 = vdwg.mxu0
    %679 = vrot.lane.b32.xlu0 %v173, 96
    %v680 = vpop.permute.xlu0 %679
    %v681 = vsel %vm94, %v267, 0
    %v683 = vsel %vm94, %v680, 0
    %685 = vmatprep.subr.mxu0 0.0
    %686 = vmatpush1.xpose.msra.mxu0 0.0
    %687 = vmatprep.subr.mxu0 0.0
    %688 = vmatpush1.xpose.msra.mxu0 0.0
    %689 = vmatprep.subr.mxu0 0.0
    %690 = vmatpush1.xpose.msra.mxu0 0.0
    %691 = vmatprep.subr.mxu0 0.0
    %692 = vmatpush1.xpose.msra.mxu0 0.0
    %693 = vmatprep.subr.mxu0 0.0
    %694 = vmatpush1.xpose.msra.mxu0 0.0
    %695 = vmatprep.subr.mxu0 0.0
    %696 = vmatpush1.xpose.msra.mxu0 0.0
    %697 = vmatprep.subr.mxu0 0.0
    %698 = vmatpush1.xpose.msra.mxu0 0.0
    %699 = vmatprep.subr.mxu0 0.0
    %700 = vmatpush1.xpose.msra.mxu0 0.0
    %701 = vmatprep.subr.mxu0 0.0
    %702 = vmatpush1.xpose.msra.mxu0 0.0
    %703 = vmatprep.subr.mxu0 0.0
    %704 = vmatpush1.xpose.msra.mxu0 0.0
    %705 = vmatprep.subr.mxu0 0.0
    %706 = vmatpush1.xpose.msra.mxu0 0.0
    %707 = vmatprep.subr.mxu0 0.0
    %708 = vmatpush1.xpose.msra.mxu0 0.0
    %709 = vmatprep.subr.mxu0 0.0
    %710 = vmatpush1.xpose.msra.mxu0 0.0
    %711 = vmatprep.subr.mxu0 0.0
    %712 = vmatpush1.xpose.msra.mxu0 0.0
    %713 = vmatprep.subr.mxu0 0.0
    %714 = vmatpush1.xpose.msra.mxu0 0.0
    %715 = vmatprep.subr.mxu0 0.0
    %716 = vmatpush1.xpose.msra.mxu0 %v683
    %717 = vmatprep.subr.mxu0 0.0
    %718 = vmatpush2.xpose.msra.mxu0 0.0
    %719 = vmatprep.subr.mxu0 0.0
    %720 = vmatpush2.xpose.msra.mxu0 0.0
    %721 = vmatprep.subr.mxu0 0.0
    %722 = vmatpush2.xpose.msra.mxu0 0.0
    %723 = vmatprep.subr.mxu0 0.0
    %724 = vmatpush2.xpose.msra.mxu0 0.0
    %725 = vmatprep.subr.mxu0 0.0
    %726 = vmatpush2.xpose.msra.mxu0 0.0
    %727 = vmatprep.subr.mxu0 0.0
    %728 = vmatpush2.xpose.msra.mxu0 0.0
    %729 = vmatprep.subr.mxu0 0.0
    %730 = vmatpush2.xpose.msra.mxu0 0.0
    %731 = vmatprep.subr.mxu0 0.0
    %732 = vmatpush2.xpose.msra.mxu0 0.0
    %733 = vmatprep.subr.mxu0 0.0
    %734 = vmatpush2.xpose.msra.mxu0 0.0
    %735 = vmatprep.subr.mxu0 0.0
    %736 = vmatpush2.xpose.msra.mxu0 0.0
    %737 = vmatprep.subr.mxu0 0.0
    %738 = vmatpush2.xpose.msra.mxu0 0.0
    %739 = vmatprep.subr.mxu0 0.0
    %740 = vmatpush2.xpose.msra.mxu0 0.0
    %741 = vmatprep.subr.mxu0 0.0
    %742 = vmatpush2.xpose.msra.mxu0 0.0
    %743 = vmatprep.subr.mxu0 0.0
    %744 = vmatpush2.xpose.msra.mxu0 0.0
    %745 = vmatprep.subr.mxu0 0.0
    %746 = vmatpush2.xpose.msra.mxu0 0.0
    %747 = vmatprep.subr.mxu0 0.0
    %748 = vmatpush2.xpose.msra.mxu0 0.0
    %749 = vmatprep.mubr.f32.mxu0 0.0
    %750 = vmatmul.mubr.f32.gmra.mxu0 %v681
    %v751 = vpop.f32.mrf.mxu0
    %v752 = vadd.f32 0.0, %v751
    %v753 = vpop.f32.mrf.mxu0
    %754 = vdwg.mxu0
    %v755 = vmul.f32 %v676, 0.17677669
    %v756 = vmul.f32 %v752, 0.17677669
    %v757 = vsel %vm428, %v755, -inf
    %758 = vmax.xlane.f32.xlu0 %v757
    %v759 = vpop.xlane.xlu0 %758
    %v760 = vsel %vm428, %v756, -inf
    %761 = vmax.xlane.f32.xlu0 %v760
    %v762 = vpop.xlane.xlu0 %761
    %v763 = vsub.f32 %v755, %v759
    %v764 = vsub.f32 %v756, %v762
    %v765 = vmul.f32 %v763, 1.442695
    %v766 = vpow.pop %v765
    %v767 = vmul.f32 %v764, 1.442695
    %v768 = vpow.pop %v767
    %v769 = vsel %vm428, %v766, 0.0
    %770 = vadd.xlane.f32.xlu0 %v769
    %v771 = vpop.xlane.xlu0 %770
    %v772 = vsel %vm428, %v768, 0.0
    %773 = vadd.xlane.f32.xlu0 %v772
    %v774 = vpop.xlane.xlu0 %773
    %v775 = vrcp.pop %v771
    %v776 = vrcp.pop %v774
    %v777 = vmul.f32 %v766, %v775
    %v778 = vmul.f32 %v768, %v776
    %779 = vrot.lane.b32.xlu0 %v168, 64
    %v780 = vpop.permute.xlu0 %779
    %v783 = vsel %vm428, %v777, 0
    %785 = vmatprep.subr.mxu0 0.0
    %786 = vmatpush1.msra.mxu0 0.0
    %787 = vmatprep.subr.mxu0 0.0
    %788 = vmatpush1.msra.mxu0 0.0
    %789 = vmatprep.subr.mxu0 0.0
    %790 = vmatpush1.msra.mxu0 0.0
    %791 = vmatprep.subr.mxu0 0.0
    %792 = vmatpush1.msra.mxu0 0.0
    %793 = vmatprep.subr.mxu0 0.0
    %794 = vmatpush1.msra.mxu0 0.0
    %795 = vmatprep.subr.mxu0 0.0
    %796 = vmatpush1.msra.mxu0 0.0
    %797 = vmatprep.subr.mxu0 0.0
    %798 = vmatpush1.msra.mxu0 0.0
    %799 = vmatprep.subr.mxu0 0.0
    %800 = vmatpush1.msra.mxu0 0.0
    %801 = vmatprep.subr.mxu0 0.0
    %802 = vmatpush1.msra.mxu0 0.0
    %803 = vmatprep.subr.mxu0 0.0
    %804 = vmatpush1.msra.mxu0 0.0
    %805 = vmatprep.subr.mxu0 0.0
    %806 = vmatpush1.msra.mxu0 0.0
    %807 = vmatprep.subr.mxu0 0.0
    %808 = vmatpush1.msra.mxu0 0.0
    %809 = vmatprep.subr.mxu0 0.0
    %810 = vmatpush1.msra.mxu0 0.0
    %811 = vmatprep.subr.mxu0 0.0
    %812 = vmatpush1.msra.mxu0 0.0
    %813 = vmatprep.subr.mxu0 0.0
    %814 = vmatpush1.msra.mxu0 0.0
    %815 = vmatprep.subr.mxu0 0.0
    %816 = vmatpush1.msra.mxu0 %v780
    %817 = vmatprep.subr.mxu0 0.0
    %818 = vmatpush2.msra.mxu0 0.0
    %819 = vmatprep.subr.mxu0 0.0
    %820 = vmatpush2.msra.mxu0 0.0
    %821 = vmatprep.subr.mxu0 0.0
    %822 = vmatpush2.msra.mxu0 0.0
    %823 = vmatprep.subr.mxu0 0.0
    %824 = vmatpush2.msra.mxu0 0.0
    %825 = vmatprep.subr.mxu0 0.0
    %826 = vmatpush2.msra.mxu0 0.0
    %827 = vmatprep.subr.mxu0 0.0
    %828 = vmatpush2.msra.mxu0 0.0
    %829 = vmatprep.subr.mxu0 0.0
    %830 = vmatpush2.msra.mxu0 0.0
    %831 = vmatprep.subr.mxu0 0.0
    %832 = vmatpush2.msra.mxu0 0.0
    %833 = vmatprep.subr.mxu0 0.0
    %834 = vmatpush2.msra.mxu0 0.0
    %835 = vmatprep.subr.mxu0 0.0
    %836 = vmatpush2.msra.mxu0 0.0
    %837 = vmatprep.subr.mxu0 0.0
    %838 = vmatpush2.msra.mxu0 0.0
    %839 = vmatprep.subr.mxu0 0.0
    %840 = vmatpush2.msra.mxu0 0.0
    %841 = vmatprep.subr.mxu0 0.0
    %842 = vmatpush2.msra.mxu0 0.0
    %843 = vmatprep.subr.mxu0 0.0
    %844 = vmatpush2.msra.mxu0 0.0
    %845 = vmatprep.subr.mxu0 0.0
    %846 = vmatpush2.msra.mxu0 0.0
    %847 = vmatprep.subr.mxu0 0.0
    %848 = vmatpush2.msra.mxu0 0.0
    %849 = vmatprep.mubr.f32.mxu0 0.0
    %850 = vmatmul.mubr.f32.gmra.mxu0 %v783
    %v851 = vpop.f32.mrf.mxu0
    %v852 = vadd.f32 0.0, %v851
    %v853 = vpop.f32.mrf.mxu0
    %854 = vdwg.mxu0
    %855 = vrot.lane.b32.xlu0 %v173, 64
    %v856 = vpop.permute.xlu0 %855
    %v859 = vsel %vm428, %v778, 0
    %861 = vmatprep.subr.mxu0 0.0
    %862 = vmatpush1.msra.mxu0 0.0
    %863 = vmatprep.subr.mxu0 0.0
    %864 = vmatpush1.msra.mxu0 0.0
    %865 = vmatprep.subr.mxu0 0.0
    %866 = vmatpush1.msra.mxu0 0.0
    %867 = vmatprep.subr.mxu0 0.0
    %868 = vmatpush1.msra.mxu0 0.0
    %869 = vmatprep.subr.mxu0 0.0
    %870 = vmatpush1.msra.mxu0 0.0
    %871 = vmatprep.subr.mxu0 0.0
    %872 = vmatpush1.msra.mxu0 0.0
    %873 = vmatprep.subr.mxu0 0.0
    %874 = vmatpush1.msra.mxu0 0.0
    %875 = vmatprep.subr.mxu0 0.0
    %876 = vmatpush1.msra.mxu0 0.0
    %877 = vmatprep.subr.mxu0 0.0
    %878 = vmatpush1.msra.mxu0 0.0
    %879 = vmatprep.subr.mxu0 0.0
    %880 = vmatpush1.msra.mxu0 0.0
    %881 = vmatprep.subr.mxu0 0.0
    %882 = vmatpush1.msra.mxu0 0.0
    %883 = vmatprep.subr.mxu0 0.0
    %884 = vmatpush1.msra.mxu0 0.0
    %885 = vmatprep.subr.mxu0 0.0
    %886 = vmatpush1.msra.mxu0 0.0
    %887 = vmatprep.subr.mxu0 0.0
    %888 = vmatpush1.msra.mxu0 0.0
    %889 = vmatprep.subr.mxu0 0.0
    %890 = vmatpush1.msra.mxu0 0.0
    %891 = vmatprep.subr.mxu0 0.0
    %892 = vmatpush1.msra.mxu0 %v856
    %893 = vmatprep.subr.mxu0 0.0
    %894 = vmatpush2.msra.mxu0 0.0
    %895 = vmatprep.subr.mxu0 0.0
    %896 = vmatpush2.msra.mxu0 0.0
    %897 = vmatprep.subr.mxu0 0.0
    %898 = vmatpush2.msra.mxu0 0.0
    %899 = vmatprep.subr.mxu0 0.0
    %900 = vmatpush2.msra.mxu0 0.0
    %901 = vmatprep.subr.mxu0 0.0
    %902 = vmatpush2.msra.mxu0 0.0
    %903 = vmatprep.subr.mxu0 0.0
    %904 = vmatpush2.msra.mxu0 0.0
    %905 = vmatprep.subr.mxu0 0.0
    %906 = vmatpush2.msra.mxu0 0.0
    %907 = vmatprep.subr.mxu0 0.0
    %908 = vmatpush2.msra.mxu0 0.0
    %909 = vmatprep.subr.mxu0 0.0
    %910 = vmatpush2.msra.mxu0 0.0
    %911 = vmatprep.subr.mxu0 0.0
    %912 = vmatpush2.msra.mxu0 0.0
    %913 = vmatprep.subr.mxu0 0.0
    %914 = vmatpush2.msra.mxu0 0.0
    %915 = vmatprep.subr.mxu0 0.0
    %916 = vmatpush2.msra.mxu0 0.0
    %917 = vmatprep.subr.mxu0 0.0
    %918 = vmatpush2.msra.mxu0 0.0
    %919 = vmatprep.subr.mxu0 0.0
    %920 = vmatpush2.msra.mxu0 0.0
    %921 = vmatprep.subr.mxu0 0.0
    %922 = vmatpush2.msra.mxu0 0.0
    %923 = vmatprep.subr.mxu0 0.0
    %924 = vmatpush2.msra.mxu0 0.0
    %925 = vmatprep.mubr.f32.mxu0 0.0
    %926 = vmatmul.mubr.f32.gmra.mxu0 %v859
    %v927 = vpop.f32.mrf.mxu0
    %v928 = vadd.f32 0.0, %v927
    %v929 = vpop.f32.mrf.mxu0
    %930 = vdwg.mxu0
    %v931 = vld [vmem:[#allocation8] sm:$0xff]
    %v932 = vld [vmem:[#allocation8 + $0x8] sm:$0xff]
    %v933 = vld [vmem:[#allocation8 + $0x10] sm:$0xff]
    %v934 = vld [vmem:[#allocation8 + $0x18] sm:$0xff]
    %s935 = scalar_lea.vmem [#allocation8], 32
    %v936 = vld [vmem:[%s935] sm:$0xff]
    %v937 = vld [vmem:[%s935 + $0x8] sm:$0xff]
    %v938 = vld [vmem:[%s935 + $0x10] sm:$0xff]
    %v939 = vld [vmem:[%s935 + $0x18] sm:$0xff]
    %v941 = vsel %vm94, %v524, 0
    %v944 = vsel %vm94, %v600, 0
    %946 = vmatprep.subr.mxu0 0.0
    %947 = vmatpush1.msra.mxu0 0.0
    %948 = vmatprep.subr.mxu0 0.0
    %949 = vmatpush1.msra.mxu0 0.0
    %950 = vmatprep.subr.mxu0 0.0
    %951 = vmatpush1.msra.mxu0 0.0
    %952 = vmatprep.subr.mxu0 0.0
    %953 = vmatpush1.msra.mxu0 0.0
    %954 = vmatprep.subr.mxu0 0.0
    %955 = vmatpush1.msra.mxu0 0.0
    %956 = vmatprep.subr.mxu0 0.0
    %957 = vmatpush1.msra.mxu0 0.0
    %958 = vmatprep.subr.mxu0 0.0
    %959 = vmatpush1.msra.mxu0 0.0
    %960 = vmatprep.subr.mxu0 0.0
    %961 = vmatpush1.msra.mxu0 0.0
    %962 = vmatprep.subr.mxu0 0.0
    %963 = vmatpush1.msra.mxu0 0.0
    %964 = vmatprep.subr.mxu0 0.0
    %965 = vmatpush1.msra.mxu0 0.0
    %966 = vmatprep.subr.mxu0 0.0
    %967 = vmatpush1.msra.mxu0 0.0
    %968 = vmatprep.subr.mxu0 0.0
    %969 = vmatpush1.msra.mxu0 0.0
    %970 = vmatprep.subr.mxu0 0.0
    %971 = vmatpush1.msra.mxu0 %v939
    %972 = vmatprep.subr.mxu0 0.0
    %973 = vmatpush1.msra.mxu0 %v938
    %974 = vmatprep.subr.mxu0 0.0
    %975 = vmatpush1.msra.mxu0 %v937
    %976 = vmatprep.subr.mxu0 0.0
    %977 = vmatpush1.msra.mxu0 %v936
    %978 = vmatprep.subr.mxu0 0.0
    %979 = vmatpush2.msra.mxu0 0.0
    %980 = vmatprep.subr.mxu0 0.0
    %981 = vmatpush2.msra.mxu0 0.0
    %982 = vmatprep.subr.mxu0 0.0
    %983 = vmatpush2.msra.mxu0 0.0
    %984 = vmatprep.subr.mxu0 0.0
    %985 = vmatpush2.msra.mxu0 0.0
    %986 = vmatprep.subr.mxu0 0.0
    %987 = vmatpush2.msra.mxu0 0.0
    %988 = vmatprep.subr.mxu0 0.0
    %989 = vmatpush2.msra.mxu0 0.0
    %990 = vmatprep.subr.mxu0 0.0
    %991 = vmatpush2.msra.mxu0 0.0
    %992 = vmatprep.subr.mxu0 0.0
    %993 = vmatpush2.msra.mxu0 0.0
    %994 = vmatprep.subr.mxu0 0.0
    %995 = vmatpush2.msra.mxu0 0.0
    %996 = vmatprep.subr.mxu0 0.0
    %997 = vmatpush2.msra.mxu0 0.0
    %998 = vmatprep.subr.mxu0 0.0
    %999 = vmatpush2.msra.mxu0 0.0
    %1000 = vmatprep.subr.mxu0 0.0
    %1001 = vmatpush2.msra.mxu0 0.0
    %1002 = vmatprep.subr.mxu0 0.0
    %1003 = vmatpush2.msra.mxu0 0.0
    %1004 = vmatprep.subr.mxu0 0.0
    %1005 = vmatpush2.msra.mxu0 0.0
    %1006 = vmatprep.subr.mxu0 0.0
    %1007 = vmatpush2.msra.mxu0 0.0
    %1008 = vmatprep.subr.mxu0 0.0
    %1009 = vmatpush2.msra.mxu0 0.0
    %1010 = vmatprep.mubr.f32.mxu0 0.0
    %1011 = vmatmul.mubr.f32.gmra.mxu0 %v941
    %v1012 = vpop.f32.mrf.mxu0
    %v1013 = vadd.f32 0.0, %v1012
    %v1014 = vpop.f32.mrf.mxu0
    %1015 = vmatprep.mubr.f32.mxu0 0.0
    %1016 = vmatmul.mubr.f32.gmra.mxu0 %v944
    %v1017 = vpop.f32.mrf.mxu0
    %v1018 = vadd.f32 0.0, %v1017
    %v1019 = vpop.f32.mrf.mxu0
    %1020 = vdwg.mxu0
    %1021 = vmatprep.subr.mxu0 0.0
    %1022 = vmatpush1.msra.mxu0 0.0
    %1023 = vmatprep.subr.mxu0 0.0
    %1024 = vmatpush1.msra.mxu0 0.0
    %1025 = vmatprep.subr.mxu0 0.0
    %1026 = vmatpush1.msra.mxu0 0.0
    %1027 = vmatprep.subr.mxu0 0.0
    %1028 = vmatpush1.msra.mxu0 0.0
    %1029 = vmatprep.subr.mxu0 0.0
    %1030 = vmatpush1.msra.mxu0 0.0
    %1031 = vmatprep.subr.mxu0 0.0
    %1032 = vmatpush1.msra.mxu0 0.0
    %1033 = vmatprep.subr.mxu0 0.0
    %1034 = vmatpush1.msra.mxu0 0.0
    %1035 = vmatprep.subr.mxu0 0.0
    %1036 = vmatpush1.msra.mxu0 0.0
    %1037 = vmatprep.subr.mxu0 0.0
    %1038 = vmatpush1.msra.mxu0 0.0
    %1039 = vmatprep.subr.mxu0 0.0
    %1040 = vmatpush1.msra.mxu0 0.0
    %1041 = vmatprep.subr.mxu0 0.0
    %1042 = vmatpush1.msra.mxu0 0.0
    %1043 = vmatprep.subr.mxu0 0.0
    %1044 = vmatpush1.msra.mxu0 0.0
    %1045 = vmatprep.subr.mxu0 0.0
    %1046 = vmatpush1.msra.mxu0 %v934
    %1047 = vmatprep.subr.mxu0 0.0
    %1048 = vmatpush1.msra.mxu0 %v933
    %1049 = vmatprep.subr.mxu0 0.0
    %1050 = vmatpush1.msra.mxu0 %v932
    %1051 = vmatprep.subr.mxu0 0.0
    %1052 = vmatpush1.msra.mxu0 %v931
    %1053 = vmatprep.subr.mxu0 0.0
    %1054 = vmatpush2.msra.mxu0 0.0
    %1055 = vmatprep.subr.mxu0 0.0
    %1056 = vmatpush2.msra.mxu0 0.0
    %1057 = vmatprep.subr.mxu0 0.0
    %1058 = vmatpush2.msra.mxu0 0.0
    %1059 = vmatprep.subr.mxu0 0.0
    %1060 = vmatpush2.msra.mxu0 0.0
    %1061 = vmatprep.subr.mxu0 0.0
    %1062 = vmatpush2.msra.mxu0 0.0
    %1063 = vmatprep.subr.mxu0 0.0
    %1064 = vmatpush2.msra.mxu0 0.0
    %1065 = vmatprep.subr.mxu0 0.0
    %1066 = vmatpush2.msra.mxu0 0.0
    %1067 = vmatprep.subr.mxu0 0.0
    %1068 = vmatpush2.msra.mxu0 0.0
    %1069 = vmatprep.subr.mxu0 0.0
    %1070 = vmatpush2.msra.mxu0 0.0
    %1071 = vmatprep.subr.mxu0 0.0
    %1072 = vmatpush2.msra.mxu0 0.0
    %1073 = vmatprep.subr.mxu0 0.0
    %1074 = vmatpush2.msra.mxu0 0.0
    %1075 = vmatprep.subr.mxu0 0.0
    %1076 = vmatpush2.msra.mxu0 0.0
    %1077 = vmatprep.subr.mxu0 0.0
    %1078 = vmatpush2.msra.mxu0 0.0
    %1079 = vmatprep.subr.mxu0 0.0
    %1080 = vmatpush2.msra.mxu0 0.0
    %1081 = vmatprep.subr.mxu0 0.0
    %1082 = vmatpush2.msra.mxu0 0.0
    %1083 = vmatprep.subr.mxu0 0.0
    %1084 = vmatpush2.msra.mxu0 0.0
    %1085 = vmatprep.mubr.f32.mxu0 0.0
    %1086 = vmatmul.mubr.f32.gmra.mxu0 %v96
    %v1087 = vpop.f32.mrf.mxu0
    %v1088 = vadd.f32 %v1013, %v1087
    %v1089 = vpop.f32.mrf.mxu0
    %1090 = vmatprep.mubr.f32.mxu0 0.0
    %1091 = vmatmul.mubr.f32.gmra.mxu0 %v99
    %v1092 = vpop.f32.mrf.mxu0
    %v1093 = vadd.f32 %v1018, %v1092
    %v1094 = vpop.f32.mrf.mxu0
    %1095 = vdwg.mxu0
    %v1096 = vld [vmem:[%s5] sm:$0x1]
    %v1098 = vlaneseq
    %v1099 = vshrl.u32 %v1098, 7
    %v1100 = vsub.s32 0, %v1099
    %v1101 = vrot.slane %v1096, %v1100
    %v1103 = vadd.f32 %v1088, %v1101
    %v1104 = vadd.f32 %v1093, %v1101
    %s1105 = scalar_lea.vmem [#allocation8], 64
    %v1106 = vld [vmem:[%s1105] sm:$0xff]
    %v1107 = vld [vmem:[%s1105 + $0x8] sm:$0xff]
    %v1108 = vld [vmem:[%s1105 + $0x10] sm:$0xff]
    %v1109 = vld [vmem:[%s1105 + $0x18] sm:$0xff]
    %s1110 = scalar_lea.vmem [#allocation8], 96
    %v1111 = vld [vmem:[%s1110] sm:$0xff]
    %v1112 = vld [vmem:[%s1110 + $0x8] sm:$0xff]
    %v1113 = vld [vmem:[%s1110 + $0x10] sm:$0xff]
    %v1114 = vld [vmem:[%s1110 + $0x18] sm:$0xff]
    %v1116 = vsel %vm94, %v852, 0
    %v1119 = vsel %vm94, %v928, 0
    %1121 = vmatprep.subr.mxu0 0.0
    %1122 = vmatpush1.msra.mxu0 0.0
    %1123 = vmatprep.subr.mxu0 0.0
    %1124 = vmatpush1.msra.mxu0 0.0
    %1125 = vmatprep.subr.mxu0 0.0
    %1126 = vmatpush1.msra.mxu0 0.0
    %1127 = vmatprep.subr.mxu0 0.0
    %1128 = vmatpush1.msra.mxu0 0.0
    %1129 = vmatprep.subr.mxu0 0.0
    %1130 = vmatpush1.msra.mxu0 0.0
    %1131 = vmatprep.subr.mxu0 0.0
    %1132 = vmatpush1.msra.mxu0 0.0
    %1133 = vmatprep.subr.mxu0 0.0
    %1134 = vmatpush1.msra.mxu0 0.0
    %1135 = vmatprep.subr.mxu0 0.0
    %1136 = vmatpush1.msra.mxu0 0.0
    %1137 = vmatprep.subr.mxu0 0.0
    %1138 = vmatpush1.msra.mxu0 0.0
    %1139 = vmatprep.subr.mxu0 0.0
    %1140 = vmatpush1.msra.mxu0 0.0
    %1141 = vmatprep.subr.mxu0 0.0
    %1142 = vmatpush1.msra.mxu0 0.0
    %1143 = vmatprep.subr.mxu0 0.0
    %1144 = vmatpush1.msra.mxu0 0.0
    %1145 = vmatprep.subr.mxu0 0.0
    %1146 = vmatpush1.msra.mxu0 %v1114
    %1147 = vmatprep.subr.mxu0 0.0
    %1148 = vmatpush1.msra.mxu0 %v1113
    %1149 = vmatprep.subr.mxu0 0.0
    %1150 = vmatpush1.msra.mxu0 %v1112
    %1151 = vmatprep.subr.mxu0 0.0
    %1152 = vmatpush1.msra.mxu0 %v1111
    %1153 = vmatprep.subr.mxu0 0.0
    %1154 = vmatpush2.msra.mxu0 0.0
    %1155 = vmatprep.subr.mxu0 0.0
    %1156 = vmatpush2.msra.mxu0 0.0
    %1157 = vmatprep.subr.mxu0 0.0
    %1158 = vmatpush2.msra.mxu0 0.0
    %1159 = vmatprep.subr.mxu0 0.0
    %1160 = vmatpush2.msra.mxu0 0.0
    %1161 = vmatprep.subr.mxu0 0.0
    %1162 = vmatpush2.msra.mxu0 0.0
    %1163 = vmatprep.subr.mxu0 0.0
    %1164 = vmatpush2.msra.mxu0 0.0
    %1165 = vmatprep.subr.mxu0 0.0
    %1166 = vmatpush2.msra.mxu0 0.0
    %1167 = vmatprep.subr.mxu0 0.0
    %1168 = vmatpush2.msra.mxu0 0.0
    %1169 = vmatprep.subr.mxu0 0.0
    %1170 = vmatpush2.msra.mxu0 0.0
    %1171 = vmatprep.subr.mxu0 0.0
    %1172 = vmatpush2.msra.mxu0 0.0
    %1173 = vmatprep.subr.mxu0 0.0
    %1174 = vmatpush2.msra.mxu0 0.0
    %1175 = vmatprep.subr.mxu0 0.0
    %1176 = vmatpush2.msra.mxu0 0.0
    %1177 = vmatprep.subr.mxu0 0.0
    %1178 = vmatpush2.msra.mxu0 0.0
    %1179 = vmatprep.subr.mxu0 0.0
    %1180 = vmatpush2.msra.mxu0 0.0
    %1181 = vmatprep.subr.mxu0 0.0
    %1182 = vmatpush2.msra.mxu0 0.0
    %1183 = vmatprep.subr.mxu0 0.0
    %1184 = vmatpush2.msra.mxu0 0.0
    %1185 = vmatprep.mubr.f32.mxu0 0.0
    %1186 = vmatmul.mubr.f32.gmra.mxu0 %v1116
    %v1187 = vpop.f32.mrf.mxu0
    %v1188 = vadd.f32 0.0, %v1187
    %v1189 = vpop.f32.mrf.mxu0
    %1190 = vmatprep.mubr.f32.mxu0 0.0
    %1191 = vmatmul.mubr.f32.gmra.mxu0 %v1119
    %v1192 = vpop.f32.mrf.mxu0
    %v1193 = vadd.f32 0.0, %v1192
    %v1194 = vpop.f32.mrf.mxu0
    %1195 = vdwg.mxu0
    %1196 = vmatprep.subr.mxu0 0.0
    %1197 = vmatpush1.msra.mxu0 0.0
    %1198 = vmatprep.subr.mxu0 0.0
    %1199 = vmatpush1.msra.mxu0 0.0
    %1200 = vmatprep.subr.mxu0 0.0
    %1201 = vmatpush1.msra.mxu0 0.0
    %1202 = vmatprep.subr.mxu0 0.0
    %1203 = vmatpush1.msra.mxu0 0.0
    %1204 = vmatprep.subr.mxu0 0.0
    %1205 = vmatpush1.msra.mxu0 0.0
    %1206 = vmatprep.subr.mxu0 0.0
    %1207 = vmatpush1.msra.mxu0 0.0
    %1208 = vmatprep.subr.mxu0 0.0
    %1209 = vmatpush1.msra.mxu0 0.0
    %1210 = vmatprep.subr.mxu0 0.0
    %1211 = vmatpush1.msra.mxu0 0.0
    %1212 = vmatprep.subr.mxu0 0.0
    %1213 = vmatpush1.msra.mxu0 0.0
    %1214 = vmatprep.subr.mxu0 0.0
    %1215 = vmatpush1.msra.mxu0 0.0
    %1216 = vmatprep.subr.mxu0 0.0
    %1217 = vmatpush1.msra.mxu0 0.0
    %1218 = vmatprep.subr.mxu0 0.0
    %1219 = vmatpush1.msra.mxu0 0.0
    %1220 = vmatprep.subr.mxu0 0.0
    %1221 = vmatpush1.msra.mxu0 %v1109
    %1222 = vmatprep.subr.mxu0 0.0
    %1223 = vmatpush1.msra.mxu0 %v1108
    %1224 = vmatprep.subr.mxu0 0.0
    %1225 = vmatpush1.msra.mxu0 %v1107
    %1226 = vmatprep.subr.mxu0 0.0
    %1227 = vmatpush1.msra.mxu0 %v1106
    %1228 = vmatprep.subr.mxu0 0.0
    %1229 = vmatpush2.msra.mxu0 0.0
    %1230 = vmatprep.subr.mxu0 0.0
    %1231 = vmatpush2.msra.mxu0 0.0
    %1232 = vmatprep.subr.mxu0 0.0
    %1233 = vmatpush2.msra.mxu0 0.0
    %1234 = vmatprep.subr.mxu0 0.0
    %1235 = vmatpush2.msra.mxu0 0.0
    %1236 = vmatprep.subr.mxu0 0.0
    %1237 = vmatpush2.msra.mxu0 0.0
    %1238 = vmatprep.subr.mxu0 0.0
    %1239 = vmatpush2.msra.mxu0 0.0
    %1240 = vmatprep.subr.mxu0 0.0
    %1241 = vmatpush2.msra.mxu0 0.0
    %1242 = vmatprep.subr.mxu0 0.0
    %1243 = vmatpush2.msra.mxu0 0.0
    %1244 = vmatprep.subr.mxu0 0.0
    %1245 = vmatpush2.msra.mxu0 0.0
    %1246 = vmatprep.subr.mxu0 0.0
    %1247 = vmatpush2.msra.mxu0 0.0
    %1248 = vmatprep.subr.mxu0 0.0
    %1249 = vmatpush2.msra.mxu0 0.0
    %1250 = vmatprep.subr.mxu0 0.0
    %1251 = vmatpush2.msra.mxu0 0.0
    %1252 = vmatprep.subr.mxu0 0.0
    %1253 = vmatpush2.msra.mxu0 0.0
    %1254 = vmatprep.subr.mxu0 0.0
    %1255 = vmatpush2.msra.mxu0 0.0
    %1256 = vmatprep.subr.mxu0 0.0
    %1257 = vmatpush2.msra.mxu0 0.0
    %1258 = vmatprep.subr.mxu0 0.0
    %1259 = vmatpush2.msra.mxu0 0.0
    %1260 = vmatprep.mubr.f32.mxu0 0.0
    %1261 = vmatmul.mubr.f32.gmra.mxu0 %v190
    %v1262 = vpop.f32.mrf.mxu0
    %v1263 = vadd.f32 %v1188, %v1262
    %v1264 = vpop.f32.mrf.mxu0
    %1265 = vmatprep.mubr.f32.mxu0 0.0
    %1266 = vmatmul.mubr.f32.gmra.mxu0 %v193
    %v1267 = vpop.f32.mrf.mxu0
    %v1268 = vadd.f32 %v1193, %v1267
    %v1269 = vpop.f32.mrf.mxu0
    %1270 = vdwg.mxu0
    %s1271 = scalar_lea.vmem %s5, 1
    %v1272 = vld [vmem:[%s1271] sm:$0x1]
    %v1274 = vlaneseq
    %v1275 = vshrl.u32 %v1274, 7
    %v1276 = vsub.s32 0, %v1275
    %v1277 = vrot.slane %v1272, %v1276
    %v1279 = vadd.f32 %v1263, %v1277
    %v1280 = vadd.f32 %v1268, %v1277
    %1281 = vst.msk [vmem:[#allocation10] sm:$0xff] %vm94, %v1103
    %1282 = vst.msk [vmem:[#allocation10 + $0x10] sm:$0xff] %vm94, %v1104
    %1283 = vst.msk [vmem:[#allocation10 + $0x8] sm:$0xff] %vm94, %v1279
    %1284 = vst.msk [vmem:[#allocation10 + $0x18] sm:$0xff] %vm94, %v1280
    // Predicated region
    $region42: #{tpu_custom_call.1} parent=1 // pred_check
      _
    $region43: #{tpu_custom_call.1} parent=1 // pred_check_branch
      %1286 = sbr.rel (0) target = $region45
    $region44: #{tpu_custom_call.1} parent=1 // pred_region
      %s1288 = ssub.s32 512, 512
      %1289 = vsyncadd [#allocation4], %s1288
      %s1290 = sshll.u32 [#allocation10], 4
      %s1291 = int_to_ptr.vmem [resolvable:$true] %s1290
      %1296 = dma.vmem_to_hbm [thread:$0]  %s1291, 512, %s6, [#allocation4], 128, 128, 8
    $region45: #{tpu_custom_call.1} parent=1 // pred_fallthru
      _
    // Predicated region
    $region46: #{tpu_custom_call.1} parent=1 // pred_check
      _
    $region47: #{tpu_custom_call.1} parent=1 // pred_check_branch
      %1298 = sbr.rel (0) target = $region49
    $region48: #{tpu_custom_call.1} parent=1 // pred_region
      %1299 = dma.done [#allocation4], 512
    $region49: #{tpu_custom_call.1} parent=1 // pred_fallthru
      _
    %1300 = vsyncpa [#allocation3], 1
    %1301 = vsyncpa [#allocation6], 1
    %1302 = vsyncpa [#allocation9], 1
    %1303 = vsyncpa [#allocation4], 1

</llo_original>
